<compile_context>
chip_gen: v7x
topology: tpu7x:2x2x1
jax: 0.10.0
libtpu: 0.0.40
codegen_flags: <defaults>
</compile_context>

<pallas_src>
import functools

import jax
import jax.numpy as jnp
from jax.experimental import pallas as pl
from jax.experimental.pallas import tpu as pltpu

_LANES = 128


def _chamfer_kernel(x_ref, yt_ref, d1_ref, d2_ref, d1_fold, d2_acc, *, tn, tm):
    """One (batch, n-tile, m-tile) grid step.

    x_ref  : (1, tn, 3)        xyz1 tile (rows = points)
    yt_ref : (1, 3, tm)        xyz2 tile, transposed so m is lane-dense
    d1_ref : (1, 1, tn)        lane-dense dist1 block (resident across m axis)
    d2_ref : (1, 1, tm)        lane-dense dist2 block for this m tile
    d1_fold: (tn, 128)         scratch: lane-folded running min over m
    d2_acc : (m_tiles, 1, tm)  scratch: running min over n tiles, whole m range
    """
    ni = pl.program_id(1)
    mi = pl.program_id(2)
    last_mi = pl.num_programs(2) - 1

    x = x_ref[0].astype(jnp.float32)        # (tn, 3)
    yt = yt_ref[0].astype(jnp.float32)      # (3, tm)

    # Squared distances for this tile pair: (tn, tm).  Pure VPU work.
    e0 = x[:, 0:1] - yt[0:1, :]
    e1 = x[:, 1:2] - yt[1:2, :]
    e2 = x[:, 2:3] - yt[2:3, :]
    dist = e0 * e0 + e1 * e1 + e2 * e2

    # ---- dist1: min over m -------------------------------------------------
    # Fold the tm lanes down to 128 with plain VALU mins (same ops a lane
    # reduction would do), keep the running fold in scratch, and do the single
    # cross-lane relayout (transpose + sublane min) once per n tile.
    @pl.when(mi == 0)
    def _():
        d1_fold[...] = jnp.full((tn, _LANES), jnp.inf, jnp.float32)

    fold = dist[:, 0:_LANES]
    for k in range(1, tm // _LANES):        # small fixed unroll (<= tile_m/128)
        fold = jnp.minimum(fold, dist[:, k * _LANES:(k + 1) * _LANES])
    d1_fold[...] = jnp.minimum(d1_fold[...], fold)

    @pl.when(mi == last_mi)
    def _():
        # (tn,128) -> (128,tn) XLU transpose + sublane min -> lane-dense row.
        row_min = jnp.min(jnp.transpose(d1_fold[...]), axis=0, keepdims=True)
        d1_ref[0] = row_min.astype(d1_ref.dtype)

    # ---- dist2: min over n, accumulated across n tiles ----------------------
    col_min = jnp.min(dist, axis=0, keepdims=True)           # (1, tm) lane-dense

    @pl.when(ni == 0)
    def _():
        d2_acc[mi] = jnp.full((1, tm), jnp.inf, jnp.float32)

    cur = jnp.minimum(d2_acc[mi], col_min)
    d2_acc[mi] = cur
    d2_ref[0] = cur.astype(d2_ref.dtype)    # last (ni) writeback is complete


def _round_up(v, mult):
    return (v + mult - 1) // mult * mult


def _pad_points(p, n_to):
    b, n, c = p.shape
    if n_to == n:
        return p
    pad = jnp.full((b, n_to - n, c), jnp.inf, p.dtype)
    return jnp.concatenate([p, pad], axis=1)


def chamfer_distance(xyz1, xyz2, *, tile_n=256, tile_m=1024):
    """xyz1 (b, n, 3), xyz2 (b, m, 3) -> (dist1 (b, n), dist2 (b, m))."""
    if tile_n % _LANES or tile_m % _LANES:
        raise ValueError("tile_n and tile_m must be multiples of 128")
    b, n, c1 = xyz1.shape
    b2, m, c2 = xyz2.shape
    if c1 != 3 or c2 != 3 or b2 != b:
        raise ValueError("expected xyz1 (b, n, 3) and xyz2 (b, m, 3)")

    # n tiling: tn multiple of 128 (sublane dim of the distance tile + safe
    # shape for the finalize transpose).
    tn = tile_n if n > tile_n else _round_up(n, _LANES)
    n_pad = _round_up(n, tn)
    # m tiling: lane-dense multiples of 128, one tile per innermost grid step.
    tm = tile_m if m > tile_m else _round_up(m, _LANES)
    m_pad = _round_up(m, tm)

    x1p = _pad_points(xyz1, n_pad)                               # (b, n_pad, 3)
    x2t = jnp.transpose(_pad_points(xyz2, m_pad), (0, 2, 1))     # (b, 3, m_pad)

    kernel = functools.partial(_chamfer_kernel, tn=tn, tm=tm)

    d1, d2 = pl.pallas_call(
        kernel,
        out_shape=(
            jax.ShapeDtypeStruct((b, 1, n_pad), jnp.float32),
            jax.ShapeDtypeStruct((b, 1, m_pad), jnp.float32),
        ),
        grid_spec=pltpu.PrefetchScalarGridSpec(
            num_scalar_prefetch=0,
            grid=(b, n_pad // tn, m_pad // tm),
            in_specs=[
                pl.BlockSpec((1, tn, 3), lambda bi, ni, mi: (bi, ni, 0)),
                pl.BlockSpec((1, 3, tm), lambda bi, ni, mi: (bi, 0, mi)),
            ],
            out_specs=[
                pl.BlockSpec((1, 1, tn), lambda bi, ni, mi: (bi, 0, ni)),
                pl.BlockSpec((1, 1, tm), lambda bi, ni, mi: (bi, 0, mi)),
            ],
            scratch_shapes=[
                pltpu.VMEM((tn, _LANES), jnp.float32),            # dist1 fold
                pltpu.VMEM((m_pad // tm, 1, tm), jnp.float32),    # dist2 accum
            ],
        ),
        compiler_params=pltpu.CompilerParams(
            dimension_semantics=("parallel", "arbitrary", "arbitrary"),
            vmem_limit_bytes=64 * 1024 * 1024,
        ),
    )(x1p, x2t)

    return d1[:, 0, :n], d2[:, 0, :m]


def _chamfer_ref(xyz1, xyz2):
    """Pure-JAX brute-force reference mirroring the PyTorch/CUDA op."""
    diff = xyz1[:, :, None, :] - xyz2[:, None, :, :]    # (b, n, m, 3)
    d = jnp.sum(diff * diff, axis=-1)                   # (b, n, m)
    return jnp.min(d, axis=2), jnp.min(d, axis=1)


if __name__ == "__main__":
    key = jax.random.PRNGKey(0)
    k1, k2 = jax.random.split(key)
    b, n, m = 2, 200, 192   # exercises padding on both n and m
    xyz1 = jax.random.uniform(k1, (b, n, 3), dtype=jnp.float32)
    xyz2 = jax.random.uniform(k2, (b, m, 3), dtype=jnp.float32)

    dist1, dist2 = chamfer_distance(xyz1, xyz2)
    dist1, dist2 = jax.block_until_ready((dist1, dist2))

    ref1, ref2 = _chamfer_ref(xyz1, xyz2)
    assert dist1.shape == (b, n), dist1.shape
    assert dist2.shape == (b, m), dist2.shape
    assert jnp.allclose(dist1, ref1, atol=1e-5, rtol=1e-5), float(
        jnp.max(jnp.abs(dist1 - ref1)))
    assert jnp.allclose(dist2, ref2, atol=1e-5, rtol=1e-5), float(
        jnp.max(jnp.abs(dist2 - ref2)))
    print("KERNEL_OK")
</pallas_src>

<mosaic_0001>
module attributes {stable_mosaic.version = 11 : i64} {
  func.func @_chamfer_kernel(%arg0: i32, %arg1: i32, %arg2: i32, %arg3: memref<1x256x3xf32, #tpu.memory_space<vmem>>, %arg4: memref<1x3x256xf32, #tpu.memory_space<vmem>>, %arg5: memref<1x1x256xf32, #tpu.memory_space<vmem>>, %arg6: memref<1x1x256xf32, #tpu.memory_space<vmem>>, %arg7: memref<256x128xf32, #tpu.memory_space<vmem>>, %arg8: memref<1x1x256xf32, #tpu.memory_space<vmem>>) attributes {dimension_semantics = [#tpu.dimension_semantics<parallel>, #tpu.dimension_semantics<arbitrary>, #tpu.dimension_semantics<arbitrary>], iteration_bounds = array<i64: 2, 1, 1>, scalar_prefetch = 0 : i64, scratch_operands = 2 : i64, tpu.core_type = #tpu.core_type<tc>, window_params = [{transform_indices = @transform_0, window_bounds = array<i64: 1, 256, 3>}, {transform_indices = @transform_1, window_bounds = array<i64: 1, 3, 256>}, {transform_indices = @transform_2, window_bounds = array<i64: 1, 1, 256>}, {transform_indices = @transform_3, window_bounds = array<i64: 1, 1, 256>}]} {
    %c0 = arith.constant 0 : index
    %c0_0 = arith.constant 0 : index
    %c0_1 = arith.constant 0 : index
    %0 = vector.load %arg3[%c0, %c0_0, %c0_1] : memref<1x256x3xf32, #tpu.memory_space<vmem>>, vector<1x256x3xf32>
    %1 = vector.shape_cast %0 : vector<1x256x3xf32> to vector<256x3xf32>
    %c0_2 = arith.constant 0 : index
    %c0_3 = arith.constant 0 : index
    %c0_4 = arith.constant 0 : index
    %2 = vector.load %arg4[%c0_2, %c0_3, %c0_4] : memref<1x3x256xf32, #tpu.memory_space<vmem>>, vector<1x3x256xf32>
    %3 = vector.shape_cast %2 : vector<1x3x256xf32> to vector<3x256xf32>
    %4 = vector.extract_strided_slice %1 {offsets = [0, 0], sizes = [256, 1], strides = [1, 1]} : vector<256x3xf32> to vector<256x1xf32>
    %5 = vector.extract_strided_slice %3 {offsets = [0, 0], sizes = [1, 256], strides = [1, 1]} : vector<3x256xf32> to vector<1x256xf32>
    %6 = vector.broadcast %4 : vector<256x1xf32> to vector<256x256xf32>
    %7 = vector.broadcast %5 : vector<1x256xf32> to vector<256x256xf32>
    %8 = arith.subf %6, %7 : vector<256x256xf32>
    %9 = vector.extract_strided_slice %1 {offsets = [0, 1], sizes = [256, 1], strides = [1, 1]} : vector<256x3xf32> to vector<256x1xf32>
    %10 = vector.extract_strided_slice %3 {offsets = [1, 0], sizes = [1, 256], strides = [1, 1]} : vector<3x256xf32> to vector<1x256xf32>
    %11 = vector.broadcast %9 : vector<256x1xf32> to vector<256x256xf32>
    %12 = vector.broadcast %10 : vector<1x256xf32> to vector<256x256xf32>
    %13 = arith.subf %11, %12 : vector<256x256xf32>
    %14 = vector.extract_strided_slice %1 {offsets = [0, 2], sizes = [256, 1], strides = [1, 1]} : vector<256x3xf32> to vector<256x1xf32>
    %15 = vector.extract_strided_slice %3 {offsets = [2, 0], sizes = [1, 256], strides = [1, 1]} : vector<3x256xf32> to vector<1x256xf32>
    %16 = vector.broadcast %14 : vector<256x1xf32> to vector<256x256xf32>
    %17 = vector.broadcast %15 : vector<1x256xf32> to vector<256x256xf32>
    %18 = arith.subf %16, %17 : vector<256x256xf32>
    %19 = arith.mulf %8, %8 : vector<256x256xf32>
    %20 = arith.mulf %13, %13 : vector<256x256xf32>
    %21 = arith.addf %19, %20 : vector<256x256xf32>
    %22 = arith.mulf %18, %18 : vector<256x256xf32>
    %23 = arith.addf %21, %22 : vector<256x256xf32>
    %c0_i32 = arith.constant 0 : i32
    %24 = arith.cmpi eq, %arg2, %c0_i32 : i32
    %25 = arith.extui %24 : i1 to i32
    %c0_i32_5 = arith.constant 0 : i32
    %26 = arith.cmpi ne, %25, %c0_i32_5 : i32
    scf.if %26 {
      %cst_21 = arith.constant 0x7F800000 : f32
      %52 = vector.broadcast %cst_21 : f32 to vector<256x128xf32>
      %c0_22 = arith.constant 0 : index
      %c0_23 = arith.constant 0 : index
      %53 = vector.load %arg7[%c0_22, %c0_23] : memref<256x128xf32, #tpu.memory_space<vmem>>, vector<256x128xf32>
      tpu.vector_store %arg7[%c0_22, %c0_23], %52 {strides = array<i32>} : memref<256x128xf32, #tpu.memory_space<vmem>>, vector<256x128xf32>,
    } else {
    }
    %27 = vector.extract_strided_slice %23 {offsets = [0, 0], sizes = [256, 128], strides = [1, 1]} : vector<256x256xf32> to vector<256x128xf32>
    %28 = vector.extract_strided_slice %23 {offsets = [0, 128], sizes = [256, 128], strides = [1, 1]} : vector<256x256xf32> to vector<256x128xf32>
    %29 = arith.minimumf %27, %28 : vector<256x128xf32>
    %c0_6 = arith.constant 0 : index
    %c0_7 = arith.constant 0 : index
    %30 = vector.load %arg7[%c0_6, %c0_7] : memref<256x128xf32, #tpu.memory_space<vmem>>, vector<256x128xf32>
    %31 = arith.minimumf %30, %29 : vector<256x128xf32>
    %c0_8 = arith.constant 0 : index
    %c0_9 = arith.constant 0 : index
    %32 = vector.load %arg7[%c0_8, %c0_9] : memref<256x128xf32, #tpu.memory_space<vmem>>, vector<256x128xf32>
    tpu.vector_store %arg7[%c0_8, %c0_9], %31 {strides = array<i32>} : memref<256x128xf32, #tpu.memory_space<vmem>>, vector<256x128xf32>,
    %c0_i32_10 = arith.constant 0 : i32
    %33 = arith.cmpi eq, %arg2, %c0_i32_10 : i32
    %34 = arith.extui %33 : i1 to i32
    %c0_i32_11 = arith.constant 0 : i32
    %35 = arith.cmpi ne, %34, %c0_i32_11 : i32
    scf.if %35 {
      %c0_21 = arith.constant 0 : index
      %c0_22 = arith.constant 0 : index
      %52 = vector.load %arg7[%c0_21, %c0_22] : memref<256x128xf32, #tpu.memory_space<vmem>>, vector<256x128xf32>
      %53 = tpu.transpose %52, [1, 0] : vector<256x128xf32> -> vector<128x256xf32>
      %cst_23 = arith.constant dense<0x7F800000> : vector<256xf32>
      %54 = vector.multi_reduction <minimumf>, %53, %cst_23 [0] : vector<128x256xf32> to vector<256xf32>
      %55 = vector.shape_cast %54 : vector<256xf32> to vector<1x256xf32>
      %c0_24 = arith.constant 0 : index
      %c0_25 = arith.constant 0 : index
      %c0_26 = arith.constant 0 : index
      %56 = vector.load %arg5[%c0_24, %c0_25, %c0_26] : memref<1x1x256xf32, #tpu.memory_space<vmem>>, vector<1x1x256xf32>
      %57 = vector.shape_cast %56 : vector<1x1x256xf32> to vector<1x256xf32>
      %58 = vector.shape_cast %55 : vector<1x256xf32> to vector<1x1x256xf32>
      tpu.vector_store %arg5[%c0_24, %c0_25, %c0_26], %58 {strides = array<i32>} : memref<1x1x256xf32, #tpu.memory_space<vmem>>, vector<1x1x256xf32>,
    } else {
    }
    %cst = arith.constant dense<0x7F800000> : vector<256xf32>
    %36 = vector.multi_reduction <minimumf>, %23, %cst [0] : vector<256x256xf32> to vector<256xf32>
    %37 = vector.shape_cast %36 : vector<256xf32> to vector<1x256xf32>
    %c0_i32_12 = arith.constant 0 : i32
    %38 = arith.cmpi eq, %arg1, %c0_i32_12 : i32
    %39 = arith.extui %38 : i1 to i32
    %c0_i32_13 = arith.constant 0 : i32
    %40 = arith.cmpi ne, %39, %c0_i32_13 : i32
    scf.if %40 {
      %cst_21 = arith.constant 0x7F800000 : f32
      %52 = vector.broadcast %cst_21 : f32 to vector<1x256xf32>
      %53 = arith.index_cast %arg2 : i32 to index
      %c0_22 = arith.constant 0 : index
      %c0_23 = arith.constant 0 : index
      %54 = vector.load %arg8[%53, %c0_22, %c0_23] : memref<1x1x256xf32, #tpu.memory_space<vmem>>, vector<1x1x256xf32>
      %55 = vector.shape_cast %54 : vector<1x1x256xf32> to vector<1x256xf32>
      %56 = vector.shape_cast %52 : vector<1x256xf32> to vector<1x1x256xf32>
      tpu.vector_store %arg8[%53, %c0_22, %c0_23], %56 {strides = array<i32>} : memref<1x1x256xf32, #tpu.memory_space<vmem>>, vector<1x1x256xf32>,
    } else {
    }
    %41 = arith.index_cast %arg2 : i32 to index
    %c0_14 = arith.constant 0 : index
    %c0_15 = arith.constant 0 : index
    %42 = vector.load %arg8[%41, %c0_14, %c0_15] : memref<1x1x256xf32, #tpu.memory_space<vmem>>, vector<1x1x256xf32>
    %43 = vector.shape_cast %42 : vector<1x1x256xf32> to vector<1x256xf32>
    %44 = arith.minimumf %43, %37 : vector<1x256xf32>
    %45 = arith.index_cast %arg2 : i32 to index
    %c0_16 = arith.constant 0 : index
    %c0_17 = arith.constant 0 : index
    %46 = vector.load %arg8[%45, %c0_16, %c0_17] : memref<1x1x256xf32, #tpu.memory_space<vmem>>, vector<1x1x256xf32>
    %47 = vector.shape_cast %46 : vector<1x1x256xf32> to vector<1x256xf32>
    %48 = vector.shape_cast %44 : vector<1x256xf32> to vector<1x1x256xf32>
    tpu.vector_store %arg8[%45, %c0_16, %c0_17], %48 {strides = array<i32>} : memref<1x1x256xf32, #tpu.memory_space<vmem>>, vector<1x1x256xf32>,
    %c0_18 = arith.constant 0 : index
    %c0_19 = arith.constant 0 : index
    %c0_20 = arith.constant 0 : index
    %49 = vector.load %arg6[%c0_18, %c0_19, %c0_20] : memref<1x1x256xf32, #tpu.memory_space<vmem>>, vector<1x1x256xf32>
    %50 = vector.shape_cast %49 : vector<1x1x256xf32> to vector<1x256xf32>
    %51 = vector.shape_cast %44 : vector<1x256xf32> to vector<1x1x256xf32>
    tpu.vector_store %arg6[%c0_18, %c0_19, %c0_20], %51 {strides = array<i32>} : memref<1x1x256xf32, #tpu.memory_space<vmem>>, vector<1x1x256xf32>,
    return
  }
  func.func @transform_0(%arg0: i32, %arg1: i32, %arg2: i32) -> (i32, i32, i32) {
    %c0_i32 = arith.constant 0 : i32
    %c0_i32_0 = arith.constant 0 : i32
    return %arg0, %arg1, %c0_i32 : i32, i32, i32
  }
  func.func @transform_1(%arg0: i32, %arg1: i32, %arg2: i32) -> (i32, i32, i32) {
    %c0_i32 = arith.constant 0 : i32
    %c0_i32_0 = arith.constant 0 : i32
    return %arg0, %c0_i32, %arg2 : i32, i32, i32
  }
  func.func @transform_2(%arg0: i32, %arg1: i32, %arg2: i32) -> (i32, i32, i32) {
    %c0_i32 = arith.constant 0 : i32
    %c0_i32_0 = arith.constant 0 : i32
    return %arg0, %c0_i32, %arg1 : i32, i32, i32
  }
  func.func @transform_3(%arg0: i32, %arg1: i32, %arg2: i32) -> (i32, i32, i32) {
    %c0_i32 = arith.constant 0 : i32
    %c0_i32_0 = arith.constant 0 : i32
    return %arg0, %c0_i32, %arg2 : i32, i32, i32
  }
}

</mosaic_0001>

<llo_original>
// kernel: tpu_custom_call.1
$region0: #{tpu_custom_call.1}
  #allocation0 [shape = 'u32[]', space=smem, size = 0x4, offset = 0x4, fixed_abs, tag = 'smem constant byte address 0x4 - core index']
  #allocation1 [shape = 'u32[144,128]{1,0:T(1,128)}', space=vmem, size = 0x12000, scoped, tag = 'internal scratch']
  #allocation2 [shape = 'f32[256,128]{1,0:T(8,128)}', space=vmem, size = 0x20000, scoped, tag = 'scratch operand']
  #allocation3 [shape = 'f32[1,1,256]{2,1,0:T(1,128)}', space=vmem, size = 0x400, scoped, tag = 'scratch operand']
  %s0 = inlined_call_operand.hbm [shape: f32[2,256,3], index: 0, kind: input, shape index: {}]
  %s1 = inlined_call_operand.hbm [shape: f32[2,3,256], index: 1, kind: input, shape index: {}]
  %s2 = inlined_call_operand.hbm [shape: f32[2,1,256], index: 2, kind: output, shape index: {0}]
  %s3 = inlined_call_operand.hbm [shape: f32[2,1,256], index: 3, kind: output, shape index: {1}]
  %4 = xla_tuple %s2, %s3
  %s5 = sld [smem:[#allocation0]]
  $region69: #{tpu_custom_call.1} parent=0
    _
  %s7 = ssub.s32 1, %s5
  %s8 = scalar_select 0, %s7, %s5
  $region1: #{tpu_custom_call.1} parent=0
    #allocation4 [shape = 'u8[262144]{0}', space=vmem, size = 0x40000, scoped, tag = 'input window, operand 0']
    #allocation5 [shape = 's32[2]{0}', space=sflag, size = 0x8, scoped, tag = 'scoped memory for tpu_custom_call.1']
    #allocation6 [shape = 's32[2]{0}', space=sflag, size = 0x8, scoped, tag = 'scoped memory for tpu_custom_call.1']
    #allocation7 [shape = 'u8[8192]{0}', space=vmem, size = 0x2000, scoped, tag = 'input window, operand 1']
    #allocation8 [shape = 's32[2]{0}', space=sflag, size = 0x8, scoped, tag = 'scoped memory for tpu_custom_call.1']
    #allocation9 [shape = 'u8[2048]{0}', space=vmem, size = 0x800, scoped, tag = 'output window, operand 0']
    #allocation10 [shape = 'u8[2048]{0}', space=vmem, size = 0x800, scoped, tag = 'output window, operand 1']
    #allocation11 [shape = 's32[2]{0}', space=sflag, size = 0x8, scoped, tag = 'scoped memory for tpu_custom_call.1']
    %9 = vsyncpa [#allocation5], 0
    %s10 = scalar_lea.sflag [#allocation5], 1
    %11 = vsyncpa %s10, 0
    %12 = vsyncpa [#allocation8], 0
    %s13 = scalar_lea.sflag [#allocation8], 1
    %14 = vsyncpa %s13, 0
    %15 = vsyncpa [#allocation6], 0
    %s16 = scalar_lea.sflag [#allocation6], 1
    %17 = vsyncpa %s16, 0
    %18 = vsyncpa [#allocation11], 0
    %s19 = scalar_lea.sflag [#allocation11], 1
    %20 = vsyncpa %s19, 0
    loop: start=0, step=1, limit=4
    $region2: #{tpu_custom_call.1} parent=1 // loop_pre_header
      _
    $region3: #{tpu_custom_call.1} parent=1 // loop_header
      %s22 = sphi 0, %s26
      %p23 = scmp.ge.s32.totalorder %s22, 4
      %s29 = sphi 0, %s48
      %s30 = sphi 0, %s44
      %s31 = sphi 0, %s40
      %s32 = sphi 0, %s29
      %s33 = sphi 0, %s30
      %s34 = sphi 0, %s31
      %s35 = sphi 0, %s32
      %s36 = sphi 0, %s33
      %s37 = sphi 0, %s34
      %s53 = sphi 0, %s55
      %s56 = sphi 0, %s53
      %s57 = sphi 0, %s56
      %s73 = sphi 0, %s57
      %s81 = sphi 0, %s83
      %s84 = sphi 0, %s81
      %s85 = sphi 0, %s84
      %s101 = sphi 0, %s85
      %s109 = sphi 0, %s111
      %s112 = sphi 0, %s109
      %s113 = sphi 0, %s112
      %s129 = sphi 0, %s113
      %s137 = sphi 0, %s139
      %s140 = sphi 0, %s137
      %s141 = sphi 0, %s140
      %s157 = sphi 0, %s141
    $region4: #{tpu_custom_call.1} parent=1 // loop_header_branch
      %25 = sbr.rel (%p23) target = $region8
    $region5: #{tpu_custom_call.1} parent=1 // loop_body
      %s27 = ssub.s32 %s22, 1
      %s28 = ssub.s32 %s22, 2
      %s38 = sadd.s32 1, %s31
      %p39 = scmp.ge.s32.totalorder %s38, 1
      %s40 = scalar_select %p39, 0, %s38
      %s41 = sadd.s32 1, %s30
      %s42 = scalar_select %p39, %s41, %s30
      %p43 = scmp.ge.s32.totalorder %s42, 1
      %s44 = scalar_select %p43, 0, %s42
      %s45 = sadd.s32 1, %s29
      %s46 = scalar_select %p43, %s45, %s29
      %p47 = scmp.ge.s32.totalorder %s46, 2
      %s48 = scalar_select %p47, 0, %s46
      %s49 = ssub.s32 %s29, %s48
      %s50 = ssub.s32 %s30, %s44
      %s51 = sor.u32 %s49, %s50
      %p52 = scmp.eq.s32.totalorder %s51, 0
      %s54 = sadd.s32 %s53, 1
      %s55 = scalar_select %p52, %s53, %s54
      %p58 = pneg %p52
      %p59 = scmp.eq.s32.totalorder %s22, 1
      %p60 = por %p58, %p59
      %p61 = scmp.ne.s32.totalorder %s53, %s56
      %p62 = scmp.eq.s32.totalorder %s22, 0
      %p63 = por %p61, %p62
      %p64 = scmp.ne.s32.totalorder %s53, %s56
      %p65 = scmp.eq.s32.totalorder %s27, 1
      %p66 = por %p64, %p65
      %p67 = scmp.ne.s32.totalorder %s56, %s57
      %p68 = scmp.eq.s32.totalorder %s27, 0
      %p69 = por %p67, %p68
      %p70 = scmp.ne.s32.totalorder %s56, %s57
      %p71 = scmp.eq.s32.totalorder %s28, 1
      %p72 = por %p70, %p71
      %p74 = scmp.ne.s32.totalorder %s57, %s73
      %p75 = scmp.eq.s32.totalorder %s28, 0
      %p76 = por %p74, %p75
      %s77 = ssub.s32 %s29, %s48
      %s78 = ssub.s32 %s31, %s40
      %s79 = sor.u32 %s77, %s78
      %p80 = scmp.eq.s32.totalorder %s79, 0
      %s82 = sadd.s32 %s81, 1
      %s83 = scalar_select %p80, %s81, %s82
      %p86 = pneg %p80
      %p87 = scmp.eq.s32.totalorder %s22, 1
      %p88 = por %p86, %p87
      %p89 = scmp.ne.s32.totalorder %s81, %s84
      %p90 = scmp.eq.s32.totalorder %s22, 0
      %p91 = por %p89, %p90
      %p92 = scmp.ne.s32.totalorder %s81, %s84
      %p93 = scmp.eq.s32.totalorder %s27, 1
      %p94 = por %p92, %p93
      %p95 = scmp.ne.s32.totalorder %s84, %s85
      %p96 = scmp.eq.s32.totalorder %s27, 0
      %p97 = por %p95, %p96
      %p98 = scmp.ne.s32.totalorder %s84, %s85
      %p99 = scmp.eq.s32.totalorder %s28, 1
      %p100 = por %p98, %p99
      %p102 = scmp.ne.s32.totalorder %s85, %s101
      %p103 = scmp.eq.s32.totalorder %s28, 0
      %p104 = por %p102, %p103
      %s105 = ssub.s32 %s29, %s48
      %s106 = ssub.s32 %s30, %s44
      %s107 = sor.u32 %s105, %s106
      %p108 = scmp.eq.s32.totalorder %s107, 0
      %s110 = sadd.s32 %s109, 1
      %s111 = scalar_select %p108, %s109, %s110
      %p114 = pneg %p108
      %p115 = scmp.eq.s32.totalorder %s22, 1
      %p116 = por %p114, %p115
      %p117 = scmp.ne.s32.totalorder %s109, %s112
      %p118 = scmp.eq.s32.totalorder %s22, 0
      %p119 = por %p117, %p118
      %p120 = scmp.ne.s32.totalorder %s109, %s112
      %p121 = scmp.eq.s32.totalorder %s27, 1
      %p122 = por %p120, %p121
      %p123 = scmp.ne.s32.totalorder %s112, %s113
      %p124 = scmp.eq.s32.totalorder %s27, 0
      %p125 = por %p123, %p124
      %p126 = scmp.ne.s32.totalorder %s112, %s113
      %p127 = scmp.eq.s32.totalorder %s28, 1
      %p128 = por %p126, %p127
      %p130 = scmp.ne.s32.totalorder %s113, %s129
      %p131 = scmp.eq.s32.totalorder %s28, 0
      %p132 = por %p130, %p131
      %s133 = ssub.s32 %s29, %s48
      %s134 = ssub.s32 %s31, %s40
      %s135 = sor.u32 %s133, %s134
      %p136 = scmp.eq.s32.totalorder %s135, 0
      %s138 = sadd.s32 %s137, 1
      %s139 = scalar_select %p136, %s137, %s138
      %p142 = pneg %p136
      %p143 = scmp.eq.s32.totalorder %s22, 1
      %p144 = por %p142, %p143
      %p145 = scmp.ne.s32.totalorder %s137, %s140
      %p146 = scmp.eq.s32.totalorder %s22, 0
      %p147 = por %p145, %p146
      %p148 = scmp.ne.s32.totalorder %s137, %s140
      %p149 = scmp.eq.s32.totalorder %s27, 1
      %p150 = por %p148, %p149
      %p151 = scmp.ne.s32.totalorder %s140, %s141
      %p152 = scmp.eq.s32.totalorder %s27, 0
      %p153 = por %p151, %p152
      %p154 = scmp.ne.s32.totalorder %s140, %s141
      %p155 = scmp.eq.s32.totalorder %s28, 1
      %p156 = por %p154, %p155
      %p158 = scmp.ne.s32.totalorder %s141, %s157
      %p159 = scmp.eq.s32.totalorder %s28, 0
      %p160 = por %p158, %p159
      %p161 = scmp.le.s32.totalorder 1, %s22
      %p162 = scmp.lt.s32.totalorder %s22, 3
      %p163 = pnand %p161, %p162
      %p164 = pneg %p163
      // Predicated region
      $region9: #{tpu_custom_call.1} parent=5 // pred_check
        _
      $region10: #{tpu_custom_call.1} parent=5 // pred_check_branch
        %166 = sbr.rel (%p163) target = $region12
      $region11: #{tpu_custom_call.1} parent=5 // pred_region
        %s167 = ssub.s32 %s22, 1
      $region12: #{tpu_custom_call.1} parent=5 // pred_fallthru
        _
      %p168 = scmp.lt.s32.totalorder %s22, 2
      // Predicated region
      $region13: #{tpu_custom_call.1} parent=5 // pred_check
        %p169 = pneg %p168
      $region14: #{tpu_custom_call.1} parent=5 // pred_check_branch
        %171 = sbr.rel (%p169) target = $region16
      $region15: #{tpu_custom_call.1} parent=5 // pred_region
        // Predicated region
        $region17: #{tpu_custom_call.1} parent=15 // pred_check
          %p172 = pneg %p63
        $region18: #{tpu_custom_call.1} parent=15 // pred_check_branch
          %174 = sbr.rel (%p172) target = $region20
        $region19: #{tpu_custom_call.1} parent=15 // pred_region
          %s175 = sand.u32 %s53, 1
          %s176 = scalar_lea.sflag [#allocation5], %s175
          %s177 = sand.u32 %s53, 1
          %s178 = smul.addr %s177, 256
          %s179 = scalar_lea.vmem [#allocation4], %s178
          %s180 = smul.u32 32, %s30
          %s182 = ssub.s32 4096, 4096
          %183 = vsyncadd %s176, %s182
          %s184 = smul.addr %s29, 32
          %s185 = sadd.s32 %s180, %s184
          %s186 = smul.addr %s185, 128
          %s187 = scalar_lea.hbm %s0, %s186
          %s188 = sshll.u32 %s179, 4
          %s189 = int_to_ptr.vmem [resolvable:$true] %s188
          %194 = dma.hbm_to_vmem [thread:$0]  %s187, 4096, %s189, %s176, 128, 128, 8
        $region20: #{tpu_custom_call.1} parent=15 // pred_fallthru
          _
        // Predicated region
        $region21: #{tpu_custom_call.1} parent=15 // pred_check
          %p195 = pneg %p91
        $region22: #{tpu_custom_call.1} parent=15 // pred_check_branch
          %197 = sbr.rel (%p195) target = $region24
        $region23: #{tpu_custom_call.1} parent=15 // pred_region
          %s198 = sand.u32 %s81, 1
          %s199 = scalar_lea.sflag [#allocation8], %s198
          %s200 = sand.u32 %s81, 1
          %s201 = smul.addr %s200, 8
          %s202 = scalar_lea.vmem [#allocation7], %s201
          %s203 = smul.u32 2, %s31
          %s205 = ssub.s32 128, 128
          %206 = vsyncadd %s199, %s205
          %s207 = smul.addr %s29, 2
          %s208 = sadd.s32 %s203, %s207
          %s209 = smul.addr %s208, 64
          %s210 = scalar_lea.hbm %s1, %s209
          %s212 = sshll.u32 %s202, 4
          %s213 = int_to_ptr.vmem [resolvable:$true] %s212
          %215 = dma.hbm_to_vmem [thread:$0]  %s210, 128, %s213, %s199
        $region24: #{tpu_custom_call.1} parent=15 // pred_fallthru
          _
      $region16: #{tpu_custom_call.1} parent=5 // pred_fallthru
        _
      %p216 = scmp.le.s32.totalorder 1, %s22
      %p217 = scmp.lt.s32.totalorder %s22, 3
      %p218 = pnand %p216, %p217
      %p219 = pneg %p218
      // Predicated region
      $region25: #{tpu_custom_call.1} parent=5 // pred_check
        _
      $region26: #{tpu_custom_call.1} parent=5 // pred_check_branch
        %221 = sbr.rel (%p218) target = $region28
      $region27: #{tpu_custom_call.1} parent=5 // pred_region
        %s222 = ssub.s32 %s22, 1
        %s223 = sand.u32 %s56, 1
        %s224 = scalar_lea.sflag [#allocation5], %s223
        %s225 = sand.u32 %s56, 1
        %s226 = smul.addr %s225, 256
        %s227 = scalar_lea.vmem [#allocation4], %s226
        // Predicated region
        $region29: #{tpu_custom_call.1} parent=27 // pred_check
          %p228 = pneg %p69
        $region30: #{tpu_custom_call.1} parent=27 // pred_check_branch
          %230 = sbr.rel (%p228) target = $region32
        $region31: #{tpu_custom_call.1} parent=27 // pred_region
          %231 = dma.done %s224, 4096
        $region32: #{tpu_custom_call.1} parent=27 // pred_fallthru
          _
        %s232 = sand.u32 %s84, 1
        %s233 = scalar_lea.sflag [#allocation8], %s232
        %s234 = sand.u32 %s84, 1
        %s235 = smul.addr %s234, 8
        %s236 = scalar_lea.vmem [#allocation7], %s235
        // Predicated region
        $region33: #{tpu_custom_call.1} parent=27 // pred_check
          %p237 = pneg %p97
        $region34: #{tpu_custom_call.1} parent=27 // pred_check_branch
          %239 = sbr.rel (%p237) target = $region36
        $region35: #{tpu_custom_call.1} parent=27 // pred_region
          %240 = dma.done %s233, 128
        $region36: #{tpu_custom_call.1} parent=27 // pred_fallthru
          _
        %s241 = sand.u32 %s56, 1
        %s242 = scalar_lea.sflag [#allocation5], %s241
        %s243 = sand.u32 %s56, 1
        %s244 = smul.addr %s243, 256
        %s245 = scalar_lea.vmem [#allocation4], %s244
        %p246 = pneg %p69
        %p247 = pneg %p66
        %s248 = sand.u32 %s84, 1
        %s249 = scalar_lea.sflag [#allocation8], %s248
        %s250 = sand.u32 %s84, 1
        %s251 = smul.addr %s250, 8
        %s252 = scalar_lea.vmem [#allocation7], %s251
        %p253 = pneg %p97
        %p254 = pneg %p94
        %p255 = pneg %p125
        %p256 = pneg %p122
        %s257 = sand.u32 %s112, 1
        %s258 = scalar_lea.sflag [#allocation6], %s257
        %s259 = sand.u32 %s112, 1
        %s260 = smul.addr %s259, 2
        %s261 = scalar_lea.vmem [#allocation9], %s260
        %p262 = pneg %p153
        %p263 = pneg %p150
        %s264 = sand.u32 %s140, 1
        %s265 = scalar_lea.sflag [#allocation11], %s264
        %s266 = sand.u32 %s140, 1
        %s267 = smul.addr %s266, 2
        %s268 = scalar_lea.vmem [#allocation10], %s267
        %s269 = smul.u32 32, %s33
        %s270 = smul.u32 2, %s34
        %s271 = smul.u32 2, %s33
        %s272 = smul.u32 2, %s34
        %v273 = vld [vmem:[%s227] sm:$0xff]
        %v274 = vld [vmem:[%s227 + $0x8] sm:$0xff]
        %v275 = vld [vmem:[%s227 + $0x10] sm:$0xff]
        %v276 = vld [vmem:[%s227 + $0x18] sm:$0xff]
        %v277 = vld [vmem:[%s227 + $0x20] sm:$0xff]
        %v278 = vld [vmem:[%s227 + $0x28] sm:$0xff]
        %v279 = vld [vmem:[%s227 + $0x30] sm:$0xff]
        %v280 = vld [vmem:[%s227 + $0x38] sm:$0xff]
        %v281 = vld [vmem:[%s227 + $0x40] sm:$0xff]
        %v282 = vld [vmem:[%s227 + $0x48] sm:$0xff]
        %v283 = vld [vmem:[%s227 + $0x50] sm:$0xff]
        %v284 = vld [vmem:[%s227 + $0x58] sm:$0xff]
        %v285 = vld [vmem:[%s227 + $0x60] sm:$0xff]
        %v286 = vld [vmem:[%s227 + $0x68] sm:$0xff]
        %v287 = vld [vmem:[%s227 + $0x70] sm:$0xff]
        %v288 = vld [vmem:[%s227 + $0x78] sm:$0xff]
        %v289 = vld [vmem:[%s227 + $0x80] sm:$0xff]
        %v290 = vld [vmem:[%s227 + $0x88] sm:$0xff]
        %v291 = vld [vmem:[%s227 + $0x90] sm:$0xff]
        %v292 = vld [vmem:[%s227 + $0x98] sm:$0xff]
        %v293 = vld [vmem:[%s227 + $0xa0] sm:$0xff]
        %v294 = vld [vmem:[%s227 + $0xa8] sm:$0xff]
        %v295 = vld [vmem:[%s227 + $0xb0] sm:$0xff]
        %v296 = vld [vmem:[%s227 + $0xb8] sm:$0xff]
        %v297 = vld [vmem:[%s227 + $0xc0] sm:$0xff]
        %v298 = vld [vmem:[%s227 + $0xc8] sm:$0xff]
        %v299 = vld [vmem:[%s227 + $0xd0] sm:$0xff]
        %v300 = vld [vmem:[%s227 + $0xd8] sm:$0xff]
        %v301 = vld [vmem:[%s227 + $0xe0] sm:$0xff]
        %v302 = vld [vmem:[%s227 + $0xe8] sm:$0xff]
        %v303 = vld [vmem:[%s227 + $0xf0] sm:$0xff]
        %v304 = vld [vmem:[%s227 + $0xf8] sm:$0xff]
        %v305 = vld [vmem:[%s236] sm:$0x77]
        %307 = vset.pattern.permute.xlu0 0
        %308 = vperm.xlu0 %307, %v273
        %v309 = vpop.permute.xlu0 %308
        %312 = vset.pattern.permute.xlu0 0
        %313 = vperm.xlu0 %312, %v274
        %v314 = vpop.permute.xlu0 %313
        %317 = vset.pattern.permute.xlu0 0
        %318 = vperm.xlu0 %317, %v275
        %v319 = vpop.permute.xlu0 %318
        %322 = vset.pattern.permute.xlu0 0
        %323 = vperm.xlu0 %322, %v276
        %v324 = vpop.permute.xlu0 %323
        %327 = vset.pattern.permute.xlu0 0
        %328 = vperm.xlu0 %327, %v277
        %v329 = vpop.permute.xlu0 %328
        %332 = vset.pattern.permute.xlu0 0
        %333 = vperm.xlu0 %332, %v278
        %v334 = vpop.permute.xlu0 %333
        %337 = vset.pattern.permute.xlu0 0
        %338 = vperm.xlu0 %337, %v279
        %v339 = vpop.permute.xlu0 %338
        %342 = vset.pattern.permute.xlu0 0
        %343 = vperm.xlu0 %342, %v280
        %v344 = vpop.permute.xlu0 %343
        %347 = vset.pattern.permute.xlu0 0
        %348 = vperm.xlu0 %347, %v281
        %v349 = vpop.permute.xlu0 %348
        %352 = vset.pattern.permute.xlu0 0
        %353 = vperm.xlu0 %352, %v282
        %v354 = vpop.permute.xlu0 %353
        %357 = vset.pattern.permute.xlu0 0
        %358 = vperm.xlu0 %357, %v283
        %v359 = vpop.permute.xlu0 %358
        %362 = vset.pattern.permute.xlu0 0
        %363 = vperm.xlu0 %362, %v284
        %v364 = vpop.permute.xlu0 %363
        %367 = vset.pattern.permute.xlu0 0
        %368 = vperm.xlu0 %367, %v285
        %v369 = vpop.permute.xlu0 %368
        %372 = vset.pattern.permute.xlu0 0
        %373 = vperm.xlu0 %372, %v286
        %v374 = vpop.permute.xlu0 %373
        %377 = vset.pattern.permute.xlu0 0
        %378 = vperm.xlu0 %377, %v287
        %v379 = vpop.permute.xlu0 %378
        %382 = vset.pattern.permute.xlu0 0
        %383 = vperm.xlu0 %382, %v288
        %v384 = vpop.permute.xlu0 %383
        %387 = vset.pattern.permute.xlu0 0
        %388 = vperm.xlu0 %387, %v289
        %v389 = vpop.permute.xlu0 %388
        %392 = vset.pattern.permute.xlu0 0
        %393 = vperm.xlu0 %392, %v290
        %v394 = vpop.permute.xlu0 %393
        %397 = vset.pattern.permute.xlu0 0
        %398 = vperm.xlu0 %397, %v291
        %v399 = vpop.permute.xlu0 %398
        %402 = vset.pattern.permute.xlu0 0
        %403 = vperm.xlu0 %402, %v292
        %v404 = vpop.permute.xlu0 %403
        %407 = vset.pattern.permute.xlu0 0
        %408 = vperm.xlu0 %407, %v293
        %v409 = vpop.permute.xlu0 %408
        %412 = vset.pattern.permute.xlu0 0
        %413 = vperm.xlu0 %412, %v294
        %v414 = vpop.permute.xlu0 %413
        %417 = vset.pattern.permute.xlu0 0
        %418 = vperm.xlu0 %417, %v295
        %v419 = vpop.permute.xlu0 %418
        %422 = vset.pattern.permute.xlu0 0
        %423 = vperm.xlu0 %422, %v296
        %v424 = vpop.permute.xlu0 %423
        %427 = vset.pattern.permute.xlu0 0
        %428 = vperm.xlu0 %427, %v297
        %v429 = vpop.permute.xlu0 %428
        %432 = vset.pattern.permute.xlu0 0
        %433 = vperm.xlu0 %432, %v298
        %v434 = vpop.permute.xlu0 %433
        %437 = vset.pattern.permute.xlu0 0
        %438 = vperm.xlu0 %437, %v299
        %v439 = vpop.permute.xlu0 %438
        %442 = vset.pattern.permute.xlu0 0
        %443 = vperm.xlu0 %442, %v300
        %v444 = vpop.permute.xlu0 %443
        %447 = vset.pattern.permute.xlu0 0
        %448 = vperm.xlu0 %447, %v301
        %v449 = vpop.permute.xlu0 %448
        %452 = vset.pattern.permute.xlu0 0
        %453 = vperm.xlu0 %452, %v302
        %v454 = vpop.permute.xlu0 %453
        %457 = vset.pattern.permute.xlu0 0
        %458 = vperm.xlu0 %457, %v303
        %v459 = vpop.permute.xlu0 %458
        %462 = vset.pattern.permute.xlu0 0
        %463 = vperm.xlu0 %462, %v304
        %v464 = vpop.permute.xlu0 %463
        %v467 = vlaneseq
        %v468 = vshrl.u32 %v467, 7
        %v469 = vsub.s32 0, %v468
        %v470 = vrot.slane %v305, %v469
        %v471 = vlaneseq
        %v472 = vshrl.u32 %v471, 7
        %v473 = vsub.s32 4, %v472
        %v474 = vrot.slane %v305, %v473
        %v477 = vlaneseq
        %v478 = vshrl.u32 %v477, 7
        %v479 = vsub.s32 0, %v478
        %v480 = vrot.slane %v470, %v479
        %v481 = vlaneseq
        %v482 = vshrl.u32 %v481, 7
        %v483 = vsub.s32 0, %v482
        %v484 = vrot.slane %v474, %v483
        %v485 = vsub.f32 %v309, %v480
        %v486 = vsub.f32 %v309, %v484
        %v487 = vsub.f32 %v314, %v480
        %v488 = vsub.f32 %v314, %v484
        %v489 = vsub.f32 %v319, %v480
        %v490 = vsub.f32 %v319, %v484
        %v491 = vsub.f32 %v324, %v480
        %v492 = vsub.f32 %v324, %v484
        %v493 = vsub.f32 %v329, %v480
        %v494 = vsub.f32 %v329, %v484
        %v495 = vsub.f32 %v334, %v480
        %v496 = vsub.f32 %v334, %v484
        %v497 = vsub.f32 %v339, %v480
        %v498 = vsub.f32 %v339, %v484
        %v499 = vsub.f32 %v344, %v480
        %v500 = vsub.f32 %v344, %v484
        %v501 = vsub.f32 %v349, %v480
        %v502 = vsub.f32 %v349, %v484
        %v503 = vsub.f32 %v354, %v480
        %v504 = vsub.f32 %v354, %v484
        %v505 = vsub.f32 %v359, %v480
        %v506 = vsub.f32 %v359, %v484
        %v507 = vsub.f32 %v364, %v480
        %v508 = vsub.f32 %v364, %v484
        %v509 = vsub.f32 %v369, %v480
        %v510 = vsub.f32 %v369, %v484
        %v511 = vsub.f32 %v374, %v480
        %v512 = vsub.f32 %v374, %v484
        %v513 = vsub.f32 %v379, %v480
        %v514 = vsub.f32 %v379, %v484
        %v515 = vsub.f32 %v384, %v480
        %v516 = vsub.f32 %v384, %v484
        %v517 = vsub.f32 %v389, %v480
        %v518 = vsub.f32 %v389, %v484
        %v519 = vsub.f32 %v394, %v480
        %v520 = vsub.f32 %v394, %v484
        %v521 = vsub.f32 %v399, %v480
        %v522 = vsub.f32 %v399, %v484
        %v523 = vsub.f32 %v404, %v480
        %v524 = vsub.f32 %v404, %v484
        %v525 = vsub.f32 %v409, %v480
        %v526 = vsub.f32 %v409, %v484
        %v527 = vsub.f32 %v414, %v480
        %v528 = vsub.f32 %v414, %v484
        %v529 = vsub.f32 %v419, %v480
        %v530 = vsub.f32 %v419, %v484
        %v531 = vsub.f32 %v424, %v480
        %v532 = vsub.f32 %v424, %v484
        %v533 = vsub.f32 %v429, %v480
        %v534 = vsub.f32 %v429, %v484
        %v535 = vsub.f32 %v434, %v480
        %v536 = vsub.f32 %v434, %v484
        %v537 = vsub.f32 %v439, %v480
        %v538 = vsub.f32 %v439, %v484
        %v539 = vsub.f32 %v444, %v480
        %v540 = vsub.f32 %v444, %v484
        %v541 = vsub.f32 %v449, %v480
        %v542 = vsub.f32 %v449, %v484
        %v543 = vsub.f32 %v454, %v480
        %v544 = vsub.f32 %v454, %v484
        %v545 = vsub.f32 %v459, %v480
        %v546 = vsub.f32 %v459, %v484
        %v547 = vsub.f32 %v464, %v480
        %v548 = vsub.f32 %v464, %v484
        %549 = vset.pattern.permute.xlu0 1
        %550 = vperm.xlu0 %549, %v273
        %v551 = vpop.permute.xlu0 %550
        %553 = vset.pattern.permute.xlu0 1
        %554 = vperm.xlu0 %553, %v274
        %v555 = vpop.permute.xlu0 %554
        %557 = vset.pattern.permute.xlu0 1
        %558 = vperm.xlu0 %557, %v275
        %v559 = vpop.permute.xlu0 %558
        %561 = vset.pattern.permute.xlu0 1
        %562 = vperm.xlu0 %561, %v276
        %v563 = vpop.permute.xlu0 %562
        %565 = vset.pattern.permute.xlu0 1
        %566 = vperm.xlu0 %565, %v277
        %v567 = vpop.permute.xlu0 %566
        %569 = vset.pattern.permute.xlu0 1
        %570 = vperm.xlu0 %569, %v278
        %v571 = vpop.permute.xlu0 %570
        %573 = vset.pattern.permute.xlu0 1
        %574 = vperm.xlu0 %573, %v279
        %v575 = vpop.permute.xlu0 %574
        %577 = vset.pattern.permute.xlu0 1
        %578 = vperm.xlu0 %577, %v280
        %v579 = vpop.permute.xlu0 %578
        %581 = vset.pattern.permute.xlu0 1
        %582 = vperm.xlu0 %581, %v281
        %v583 = vpop.permute.xlu0 %582
        %585 = vset.pattern.permute.xlu0 1
        %586 = vperm.xlu0 %585, %v282
        %v587 = vpop.permute.xlu0 %586
        %589 = vset.pattern.permute.xlu0 1
        %590 = vperm.xlu0 %589, %v283
        %v591 = vpop.permute.xlu0 %590
        %593 = vset.pattern.permute.xlu0 1
        %594 = vperm.xlu0 %593, %v284
        %v595 = vpop.permute.xlu0 %594
        %597 = vset.pattern.permute.xlu0 1
        %598 = vperm.xlu0 %597, %v285
        %v599 = vpop.permute.xlu0 %598
        %601 = vset.pattern.permute.xlu0 1
        %602 = vperm.xlu0 %601, %v286
        %v603 = vpop.permute.xlu0 %602
        %605 = vset.pattern.permute.xlu0 1
        %606 = vperm.xlu0 %605, %v287
        %v607 = vpop.permute.xlu0 %606
        %609 = vset.pattern.permute.xlu0 1
        %610 = vperm.xlu0 %609, %v288
        %v611 = vpop.permute.xlu0 %610
        %613 = vset.pattern.permute.xlu0 1
        %614 = vperm.xlu0 %613, %v289
        %v615 = vpop.permute.xlu0 %614
        %617 = vset.pattern.permute.xlu0 1
        %618 = vperm.xlu0 %617, %v290
        %v619 = vpop.permute.xlu0 %618
        %621 = vset.pattern.permute.xlu0 1
        %622 = vperm.xlu0 %621, %v291
        %v623 = vpop.permute.xlu0 %622
        %625 = vset.pattern.permute.xlu0 1
        %626 = vperm.xlu0 %625, %v292
        %v627 = vpop.permute.xlu0 %626
        %629 = vset.pattern.permute.xlu0 1
        %630 = vperm.xlu0 %629, %v293
        %v631 = vpop.permute.xlu0 %630
        %633 = vset.pattern.permute.xlu0 1
        %634 = vperm.xlu0 %633, %v294
        %v635 = vpop.permute.xlu0 %634
        %637 = vset.pattern.permute.xlu0 1
        %638 = vperm.xlu0 %637, %v295
        %v639 = vpop.permute.xlu0 %638
        %641 = vset.pattern.permute.xlu0 1
        %642 = vperm.xlu0 %641, %v296
        %v643 = vpop.permute.xlu0 %642
        %645 = vset.pattern.permute.xlu0 1
        %646 = vperm.xlu0 %645, %v297
        %v647 = vpop.permute.xlu0 %646
        %649 = vset.pattern.permute.xlu0 1
        %650 = vperm.xlu0 %649, %v298
        %v651 = vpop.permute.xlu0 %650
        %653 = vset.pattern.permute.xlu0 1
        %654 = vperm.xlu0 %653, %v299
        %v655 = vpop.permute.xlu0 %654
        %657 = vset.pattern.permute.xlu0 1
        %658 = vperm.xlu0 %657, %v300
        %v659 = vpop.permute.xlu0 %658
        %661 = vset.pattern.permute.xlu0 1
        %662 = vperm.xlu0 %661, %v301
        %v663 = vpop.permute.xlu0 %662
        %665 = vset.pattern.permute.xlu0 1
        %666 = vperm.xlu0 %665, %v302
        %v667 = vpop.permute.xlu0 %666
        %669 = vset.pattern.permute.xlu0 1
        %670 = vperm.xlu0 %669, %v303
        %v671 = vpop.permute.xlu0 %670
        %673 = vset.pattern.permute.xlu0 1
        %674 = vperm.xlu0 %673, %v304
        %v675 = vpop.permute.xlu0 %674
        %v677 = vlaneseq
        %v678 = vshrl.u32 %v677, 7
        %v679 = vsub.s32 1, %v678
        %v680 = vrot.slane %v305, %v679
        %v681 = vlaneseq
        %v682 = vshrl.u32 %v681, 7
        %v683 = vsub.s32 5, %v682
        %v684 = vrot.slane %v305, %v683
        %v687 = vlaneseq
        %v688 = vshrl.u32 %v687, 7
        %v689 = vsub.s32 1, %v688
        %v690 = vrot.slane %v680, %v689
        %v691 = vlaneseq
        %v692 = vshrl.u32 %v691, 7
        %v693 = vsub.s32 1, %v692
        %v694 = vrot.slane %v684, %v693
        %v695 = vsub.f32 %v551, %v690
        %v696 = vsub.f32 %v551, %v694
        %v697 = vsub.f32 %v555, %v690
        %v698 = vsub.f32 %v555, %v694
        %v699 = vsub.f32 %v559, %v690
        %v700 = vsub.f32 %v559, %v694
        %v701 = vsub.f32 %v563, %v690
        %v702 = vsub.f32 %v563, %v694
        %v703 = vsub.f32 %v567, %v690
        %v704 = vsub.f32 %v567, %v694
        %v705 = vsub.f32 %v571, %v690
        %v706 = vsub.f32 %v571, %v694
        %v707 = vsub.f32 %v575, %v690
        %v708 = vsub.f32 %v575, %v694
        %v709 = vsub.f32 %v579, %v690
        %v710 = vsub.f32 %v579, %v694
        %v711 = vsub.f32 %v583, %v690
        %v712 = vsub.f32 %v583, %v694
        %v713 = vsub.f32 %v587, %v690
        %v714 = vsub.f32 %v587, %v694
        %v715 = vsub.f32 %v591, %v690
        %v716 = vsub.f32 %v591, %v694
        %v717 = vsub.f32 %v595, %v690
        %v718 = vsub.f32 %v595, %v694
        %v719 = vsub.f32 %v599, %v690
        %v720 = vsub.f32 %v599, %v694
        %v721 = vsub.f32 %v603, %v690
        %v722 = vsub.f32 %v603, %v694
        %v723 = vsub.f32 %v607, %v690
        %v724 = vsub.f32 %v607, %v694
        %v725 = vsub.f32 %v611, %v690
        %v726 = vsub.f32 %v611, %v694
        %v727 = vsub.f32 %v615, %v690
        %v728 = vsub.f32 %v615, %v694
        %v729 = vsub.f32 %v619, %v690
        %v730 = vsub.f32 %v619, %v694
        %v731 = vsub.f32 %v623, %v690
        %v732 = vsub.f32 %v623, %v694
        %v733 = vsub.f32 %v627, %v690
        %v734 = vsub.f32 %v627, %v694
        %v735 = vsub.f32 %v631, %v690
        %v736 = vsub.f32 %v631, %v694
        %v737 = vsub.f32 %v635, %v690
        %v738 = vsub.f32 %v635, %v694
        %v739 = vsub.f32 %v639, %v690
        %v740 = vsub.f32 %v639, %v694
        %v741 = vsub.f32 %v643, %v690
        %v742 = vsub.f32 %v643, %v694
        %v743 = vsub.f32 %v647, %v690
        %v744 = vsub.f32 %v647, %v694
        %v745 = vsub.f32 %v651, %v690
        %v746 = vsub.f32 %v651, %v694
        %v747 = vsub.f32 %v655, %v690
        %v748 = vsub.f32 %v655, %v694
        %v749 = vsub.f32 %v659, %v690
        %v750 = vsub.f32 %v659, %v694
        %v751 = vsub.f32 %v663, %v690
        %v752 = vsub.f32 %v663, %v694
        %v753 = vsub.f32 %v667, %v690
        %v754 = vsub.f32 %v667, %v694
        %v755 = vsub.f32 %v671, %v690
        %v756 = vsub.f32 %v671, %v694
        %v757 = vsub.f32 %v675, %v690
        %v758 = vsub.f32 %v675, %v694
        %759 = vset.pattern.permute.xlu0 2
        %760 = vperm.xlu0 %759, %v273
        %v761 = vpop.permute.xlu0 %760
        %763 = vset.pattern.permute.xlu0 2
        %764 = vperm.xlu0 %763, %v274
        %v765 = vpop.permute.xlu0 %764
        %767 = vset.pattern.permute.xlu0 2
        %768 = vperm.xlu0 %767, %v275
        %v769 = vpop.permute.xlu0 %768
        %771 = vset.pattern.permute.xlu0 2
        %772 = vperm.xlu0 %771, %v276
        %v773 = vpop.permute.xlu0 %772
        %775 = vset.pattern.permute.xlu0 2
        %776 = vperm.xlu0 %775, %v277
        %v777 = vpop.permute.xlu0 %776
        %779 = vset.pattern.permute.xlu0 2
        %780 = vperm.xlu0 %779, %v278
        %v781 = vpop.permute.xlu0 %780
        %783 = vset.pattern.permute.xlu0 2
        %784 = vperm.xlu0 %783, %v279
        %v785 = vpop.permute.xlu0 %784
        %787 = vset.pattern.permute.xlu0 2
        %788 = vperm.xlu0 %787, %v280
        %v789 = vpop.permute.xlu0 %788
        %791 = vset.pattern.permute.xlu0 2
        %792 = vperm.xlu0 %791, %v281
        %v793 = vpop.permute.xlu0 %792
        %795 = vset.pattern.permute.xlu0 2
        %796 = vperm.xlu0 %795, %v282
        %v797 = vpop.permute.xlu0 %796
        %799 = vset.pattern.permute.xlu0 2
        %800 = vperm.xlu0 %799, %v283
        %v801 = vpop.permute.xlu0 %800
        %803 = vset.pattern.permute.xlu0 2
        %804 = vperm.xlu0 %803, %v284
        %v805 = vpop.permute.xlu0 %804
        %807 = vset.pattern.permute.xlu0 2
        %808 = vperm.xlu0 %807, %v285
        %v809 = vpop.permute.xlu0 %808
        %811 = vset.pattern.permute.xlu0 2
        %812 = vperm.xlu0 %811, %v286
        %v813 = vpop.permute.xlu0 %812
        %815 = vset.pattern.permute.xlu0 2
        %816 = vperm.xlu0 %815, %v287
        %v817 = vpop.permute.xlu0 %816
        %819 = vset.pattern.permute.xlu0 2
        %820 = vperm.xlu0 %819, %v288
        %v821 = vpop.permute.xlu0 %820
        %823 = vset.pattern.permute.xlu0 2
        %824 = vperm.xlu0 %823, %v289
        %v825 = vpop.permute.xlu0 %824
        %827 = vset.pattern.permute.xlu0 2
        %828 = vperm.xlu0 %827, %v290
        %v829 = vpop.permute.xlu0 %828
        %831 = vset.pattern.permute.xlu0 2
        %832 = vperm.xlu0 %831, %v291
        %v833 = vpop.permute.xlu0 %832
        %835 = vset.pattern.permute.xlu0 2
        %836 = vperm.xlu0 %835, %v292
        %v837 = vpop.permute.xlu0 %836
        %839 = vset.pattern.permute.xlu0 2
        %840 = vperm.xlu0 %839, %v293
        %v841 = vpop.permute.xlu0 %840
        %843 = vset.pattern.permute.xlu0 2
        %844 = vperm.xlu0 %843, %v294
        %v845 = vpop.permute.xlu0 %844
        %847 = vset.pattern.permute.xlu0 2
        %848 = vperm.xlu0 %847, %v295
        %v849 = vpop.permute.xlu0 %848
        %851 = vset.pattern.permute.xlu0 2
        %852 = vperm.xlu0 %851, %v296
        %v853 = vpop.permute.xlu0 %852
        %855 = vset.pattern.permute.xlu0 2
        %856 = vperm.xlu0 %855, %v297
        %v857 = vpop.permute.xlu0 %856
        %859 = vset.pattern.permute.xlu0 2
        %860 = vperm.xlu0 %859, %v298
        %v861 = vpop.permute.xlu0 %860
        %863 = vset.pattern.permute.xlu0 2
        %864 = vperm.xlu0 %863, %v299
        %v865 = vpop.permute.xlu0 %864
        %867 = vset.pattern.permute.xlu0 2
        %868 = vperm.xlu0 %867, %v300
        %v869 = vpop.permute.xlu0 %868
        %871 = vset.pattern.permute.xlu0 2
        %872 = vperm.xlu0 %871, %v301
        %v873 = vpop.permute.xlu0 %872
        %875 = vset.pattern.permute.xlu0 2
        %876 = vperm.xlu0 %875, %v302
        %v877 = vpop.permute.xlu0 %876
        %879 = vset.pattern.permute.xlu0 2
        %880 = vperm.xlu0 %879, %v303
        %v881 = vpop.permute.xlu0 %880
        %883 = vset.pattern.permute.xlu0 2
        %884 = vperm.xlu0 %883, %v304
        %v885 = vpop.permute.xlu0 %884
        %v887 = vlaneseq
        %v888 = vshrl.u32 %v887, 7
        %v889 = vsub.s32 2, %v888
        %v890 = vrot.slane %v305, %v889
        %v891 = vlaneseq
        %v892 = vshrl.u32 %v891, 7
        %v893 = vsub.s32 6, %v892
        %v894 = vrot.slane %v305, %v893
        %v897 = vlaneseq
        %v898 = vshrl.u32 %v897, 7
        %v899 = vsub.s32 2, %v898
        %v900 = vrot.slane %v890, %v899
        %v901 = vlaneseq
        %v902 = vshrl.u32 %v901, 7
        %v903 = vsub.s32 2, %v902
        %v904 = vrot.slane %v894, %v903
        %v905 = vsub.f32 %v761, %v900
        %v906 = vsub.f32 %v761, %v904
        %v907 = vsub.f32 %v765, %v900
        %v908 = vsub.f32 %v765, %v904
        %v909 = vsub.f32 %v769, %v900
        %v910 = vsub.f32 %v769, %v904
        %v911 = vsub.f32 %v773, %v900
        %v912 = vsub.f32 %v773, %v904
        %v913 = vsub.f32 %v777, %v900
        %v914 = vsub.f32 %v777, %v904
        %v915 = vsub.f32 %v781, %v900
        %v916 = vsub.f32 %v781, %v904
        %v917 = vsub.f32 %v785, %v900
        %v918 = vsub.f32 %v785, %v904
        %v919 = vsub.f32 %v789, %v900
        %v920 = vsub.f32 %v789, %v904
        %v921 = vsub.f32 %v793, %v900
        %v922 = vsub.f32 %v793, %v904
        %v923 = vsub.f32 %v797, %v900
        %v924 = vsub.f32 %v797, %v904
        %v925 = vsub.f32 %v801, %v900
        %v926 = vsub.f32 %v801, %v904
        %v927 = vsub.f32 %v805, %v900
        %v928 = vsub.f32 %v805, %v904
        %v929 = vsub.f32 %v809, %v900
        %v930 = vsub.f32 %v809, %v904
        %v931 = vsub.f32 %v813, %v900
        %v932 = vsub.f32 %v813, %v904
        %v933 = vsub.f32 %v817, %v900
        %v934 = vsub.f32 %v817, %v904
        %v935 = vsub.f32 %v821, %v900
        %v936 = vsub.f32 %v821, %v904
        %v937 = vsub.f32 %v825, %v900
        %v938 = vsub.f32 %v825, %v904
        %v939 = vsub.f32 %v829, %v900
        %v940 = vsub.f32 %v829, %v904
        %v941 = vsub.f32 %v833, %v900
        %v942 = vsub.f32 %v833, %v904
        %v943 = vsub.f32 %v837, %v900
        %v944 = vsub.f32 %v837, %v904
        %v945 = vsub.f32 %v841, %v900
        %v946 = vsub.f32 %v841, %v904
        %v947 = vsub.f32 %v845, %v900
        %v948 = vsub.f32 %v845, %v904
        %v949 = vsub.f32 %v849, %v900
        %v950 = vsub.f32 %v849, %v904
        %v951 = vsub.f32 %v853, %v900
        %v952 = vsub.f32 %v853, %v904
        %v953 = vsub.f32 %v857, %v900
        %v954 = vsub.f32 %v857, %v904
        %v955 = vsub.f32 %v861, %v900
        %v956 = vsub.f32 %v861, %v904
        %v957 = vsub.f32 %v865, %v900
        %v958 = vsub.f32 %v865, %v904
        %v959 = vsub.f32 %v869, %v900
        %v960 = vsub.f32 %v869, %v904
        %v961 = vsub.f32 %v873, %v900
        %v962 = vsub.f32 %v873, %v904
        %v963 = vsub.f32 %v877, %v900
        %v964 = vsub.f32 %v877, %v904
        %v965 = vsub.f32 %v881, %v900
        %v966 = vsub.f32 %v881, %v904
        %v967 = vsub.f32 %v885, %v900
        %v968 = vsub.f32 %v885, %v904
        %v969 = vmul.f32 %v485, %v485
        %v970 = vmul.f32 %v486, %v486
        %v971 = vmul.f32 %v487, %v487
        %v972 = vmul.f32 %v488, %v488
        %v973 = vmul.f32 %v489, %v489
        %v974 = vmul.f32 %v490, %v490
        %v975 = vmul.f32 %v491, %v491
        %v976 = vmul.f32 %v492, %v492
        %v977 = vmul.f32 %v493, %v493
        %v978 = vmul.f32 %v494, %v494
        %v979 = vmul.f32 %v495, %v495
        %v980 = vmul.f32 %v496, %v496
        %v981 = vmul.f32 %v497, %v497
        %v982 = vmul.f32 %v498, %v498
        %v983 = vmul.f32 %v499, %v499
        %v984 = vmul.f32 %v500, %v500
        %v985 = vmul.f32 %v501, %v501
        %v986 = vmul.f32 %v502, %v502
        %v987 = vmul.f32 %v503, %v503
        %v988 = vmul.f32 %v504, %v504
        %v989 = vmul.f32 %v505, %v505
        %v990 = vmul.f32 %v506, %v506
        %v991 = vmul.f32 %v507, %v507
        %v992 = vmul.f32 %v508, %v508
        %v993 = vmul.f32 %v509, %v509
        %v994 = vmul.f32 %v510, %v510
        %v995 = vmul.f32 %v511, %v511
        %v996 = vmul.f32 %v512, %v512
        %v997 = vmul.f32 %v513, %v513
        %v998 = vmul.f32 %v514, %v514
        %v999 = vmul.f32 %v515, %v515
        %v1000 = vmul.f32 %v516, %v516
        %v1001 = vmul.f32 %v517, %v517
        %v1002 = vmul.f32 %v518, %v518
        %v1003 = vmul.f32 %v519, %v519
        %v1004 = vmul.f32 %v520, %v520
        %v1005 = vmul.f32 %v521, %v521
        %v1006 = vmul.f32 %v522, %v522
        %v1007 = vmul.f32 %v523, %v523
        %v1008 = vmul.f32 %v524, %v524
        %v1009 = vmul.f32 %v525, %v525
        %v1010 = vmul.f32 %v526, %v526
        %v1011 = vmul.f32 %v527, %v527
        %v1012 = vmul.f32 %v528, %v528
        %v1013 = vmul.f32 %v529, %v529
        %v1014 = vmul.f32 %v530, %v530
        %v1015 = vmul.f32 %v531, %v531
        %v1016 = vmul.f32 %v532, %v532
        %v1017 = vmul.f32 %v533, %v533
        %v1018 = vmul.f32 %v534, %v534
        %v1019 = vmul.f32 %v535, %v535
        %v1020 = vmul.f32 %v536, %v536
        %v1021 = vmul.f32 %v537, %v537
        %v1022 = vmul.f32 %v538, %v538
        %v1023 = vmul.f32 %v539, %v539
        %v1024 = vmul.f32 %v540, %v540
        %v1025 = vmul.f32 %v541, %v541
        %v1026 = vmul.f32 %v542, %v542
        %v1027 = vmul.f32 %v543, %v543
        %v1028 = vmul.f32 %v544, %v544
        %v1029 = vmul.f32 %v545, %v545
        %v1030 = vmul.f32 %v546, %v546
        %v1031 = vmul.f32 %v547, %v547
        %v1032 = vmul.f32 %v548, %v548
        %v1033 = vmul.f32 %v695, %v695
        %v1034 = vmul.f32 %v696, %v696
        %v1035 = vmul.f32 %v697, %v697
        %v1036 = vmul.f32 %v698, %v698
        %v1037 = vmul.f32 %v699, %v699
        %v1038 = vmul.f32 %v700, %v700
        %v1039 = vmul.f32 %v701, %v701
        %v1040 = vmul.f32 %v702, %v702
        %v1041 = vmul.f32 %v703, %v703
        %v1042 = vmul.f32 %v704, %v704
        %v1043 = vmul.f32 %v705, %v705
        %v1044 = vmul.f32 %v706, %v706
        %v1045 = vmul.f32 %v707, %v707
        %v1046 = vmul.f32 %v708, %v708
        %v1047 = vmul.f32 %v709, %v709
        %v1048 = vmul.f32 %v710, %v710
        %v1049 = vmul.f32 %v711, %v711
        %v1050 = vmul.f32 %v712, %v712
        %v1051 = vmul.f32 %v713, %v713
        %v1052 = vmul.f32 %v714, %v714
        %v1053 = vmul.f32 %v715, %v715
        %v1054 = vmul.f32 %v716, %v716
        %v1055 = vmul.f32 %v717, %v717
        %v1056 = vmul.f32 %v718, %v718
        %v1057 = vmul.f32 %v719, %v719
        %v1058 = vmul.f32 %v720, %v720
        %v1059 = vmul.f32 %v721, %v721
        %v1060 = vmul.f32 %v722, %v722
        %v1061 = vmul.f32 %v723, %v723
        %v1062 = vmul.f32 %v724, %v724
        %v1063 = vmul.f32 %v725, %v725
        %v1064 = vmul.f32 %v726, %v726
        %v1065 = vmul.f32 %v727, %v727
        %v1066 = vmul.f32 %v728, %v728
        %v1067 = vmul.f32 %v729, %v729
        %v1068 = vmul.f32 %v730, %v730
        %v1069 = vmul.f32 %v731, %v731
        %v1070 = vmul.f32 %v732, %v732
        %v1071 = vmul.f32 %v733, %v733
        %v1072 = vmul.f32 %v734, %v734
        %v1073 = vmul.f32 %v735, %v735
        %v1074 = vmul.f32 %v736, %v736
        %v1075 = vmul.f32 %v737, %v737
        %v1076 = vmul.f32 %v738, %v738
        %v1077 = vmul.f32 %v739, %v739
        %v1078 = vmul.f32 %v740, %v740
        %v1079 = vmul.f32 %v741, %v741
        %v1080 = vmul.f32 %v742, %v742
        %v1081 = vmul.f32 %v743, %v743
        %v1082 = vmul.f32 %v744, %v744
        %v1083 = vmul.f32 %v745, %v745
        %v1084 = vmul.f32 %v746, %v746
        %v1085 = vmul.f32 %v747, %v747
        %v1086 = vmul.f32 %v748, %v748
        %v1087 = vmul.f32 %v749, %v749
        %v1088 = vmul.f32 %v750, %v750
        %v1089 = vmul.f32 %v751, %v751
        %v1090 = vmul.f32 %v752, %v752
        %v1091 = vmul.f32 %v753, %v753
        %v1092 = vmul.f32 %v754, %v754
        %v1093 = vmul.f32 %v755, %v755
        %v1094 = vmul.f32 %v756, %v756
        %v1095 = vmul.f32 %v757, %v757
        %v1096 = vmul.f32 %v758, %v758
        %v1097 = vadd.f32 %v969, %v1033
        %v1098 = vadd.f32 %v970, %v1034
        %v1099 = vadd.f32 %v971, %v1035
        %v1100 = vadd.f32 %v972, %v1036
        %v1101 = vadd.f32 %v973, %v1037
        %v1102 = vadd.f32 %v974, %v1038
        %v1103 = vadd.f32 %v975, %v1039
        %v1104 = vadd.f32 %v976, %v1040
        %v1105 = vadd.f32 %v977, %v1041
        %v1106 = vadd.f32 %v978, %v1042
        %v1107 = vadd.f32 %v979, %v1043
        %v1108 = vadd.f32 %v980, %v1044
        %v1109 = vadd.f32 %v981, %v1045
        %v1110 = vadd.f32 %v982, %v1046
        %v1111 = vadd.f32 %v983, %v1047
        %v1112 = vadd.f32 %v984, %v1048
        %v1113 = vadd.f32 %v985, %v1049
        %v1114 = vadd.f32 %v986, %v1050
        %v1115 = vadd.f32 %v987, %v1051
        %v1116 = vadd.f32 %v988, %v1052
        %v1117 = vadd.f32 %v989, %v1053
        %v1118 = vadd.f32 %v990, %v1054
        %v1119 = vadd.f32 %v991, %v1055
        %v1120 = vadd.f32 %v992, %v1056
        %v1121 = vadd.f32 %v993, %v1057
        %v1122 = vadd.f32 %v994, %v1058
        %v1123 = vadd.f32 %v995, %v1059
        %v1124 = vadd.f32 %v996, %v1060
        %v1125 = vadd.f32 %v997, %v1061
        %v1126 = vadd.f32 %v998, %v1062
        %v1127 = vadd.f32 %v999, %v1063
        %v1128 = vadd.f32 %v1000, %v1064
        %v1129 = vadd.f32 %v1001, %v1065
        %v1130 = vadd.f32 %v1002, %v1066
        %v1131 = vadd.f32 %v1003, %v1067
        %v1132 = vadd.f32 %v1004, %v1068
        %v1133 = vadd.f32 %v1005, %v1069
        %v1134 = vadd.f32 %v1006, %v1070
        %v1135 = vadd.f32 %v1007, %v1071
        %v1136 = vadd.f32 %v1008, %v1072
        %v1137 = vadd.f32 %v1009, %v1073
        %v1138 = vadd.f32 %v1010, %v1074
        %v1139 = vadd.f32 %v1011, %v1075
        %v1140 = vadd.f32 %v1012, %v1076
        %v1141 = vadd.f32 %v1013, %v1077
        %v1142 = vadd.f32 %v1014, %v1078
        %v1143 = vadd.f32 %v1015, %v1079
        %v1144 = vadd.f32 %v1016, %v1080
        %v1145 = vadd.f32 %v1017, %v1081
        %v1146 = vadd.f32 %v1018, %v1082
        %v1147 = vadd.f32 %v1019, %v1083
        %v1148 = vadd.f32 %v1020, %v1084
        %v1149 = vadd.f32 %v1021, %v1085
        %v1150 = vadd.f32 %v1022, %v1086
        %v1151 = vadd.f32 %v1023, %v1087
        %v1152 = vadd.f32 %v1024, %v1088
        %v1153 = vadd.f32 %v1025, %v1089
        %v1154 = vadd.f32 %v1026, %v1090
        %v1155 = vadd.f32 %v1027, %v1091
        %v1156 = vadd.f32 %v1028, %v1092
        %v1157 = vadd.f32 %v1029, %v1093
        %v1158 = vadd.f32 %v1030, %v1094
        %v1159 = vadd.f32 %v1031, %v1095
        %v1160 = vadd.f32 %v1032, %v1096
        %v1161 = vmul.f32 %v905, %v905
        %v1162 = vmul.f32 %v906, %v906
        %v1163 = vmul.f32 %v907, %v907
        %v1164 = vmul.f32 %v908, %v908
        %v1165 = vmul.f32 %v909, %v909
        %v1166 = vmul.f32 %v910, %v910
        %v1167 = vmul.f32 %v911, %v911
        %v1168 = vmul.f32 %v912, %v912
        %v1169 = vmul.f32 %v913, %v913
        %v1170 = vmul.f32 %v914, %v914
        %v1171 = vmul.f32 %v915, %v915
        %v1172 = vmul.f32 %v916, %v916
        %v1173 = vmul.f32 %v917, %v917
        %v1174 = vmul.f32 %v918, %v918
        %v1175 = vmul.f32 %v919, %v919
        %v1176 = vmul.f32 %v920, %v920
        %v1177 = vmul.f32 %v921, %v921
        %v1178 = vmul.f32 %v922, %v922
        %v1179 = vmul.f32 %v923, %v923
        %v1180 = vmul.f32 %v924, %v924
        %v1181 = vmul.f32 %v925, %v925
        %v1182 = vmul.f32 %v926, %v926
        %v1183 = vmul.f32 %v927, %v927
        %v1184 = vmul.f32 %v928, %v928
        %v1185 = vmul.f32 %v929, %v929
        %v1186 = vmul.f32 %v930, %v930
        %v1187 = vmul.f32 %v931, %v931
        %v1188 = vmul.f32 %v932, %v932
        %v1189 = vmul.f32 %v933, %v933
        %v1190 = vmul.f32 %v934, %v934
        %v1191 = vmul.f32 %v935, %v935
        %v1192 = vmul.f32 %v936, %v936
        %v1193 = vmul.f32 %v937, %v937
        %v1194 = vmul.f32 %v938, %v938
        %v1195 = vmul.f32 %v939, %v939
        %v1196 = vmul.f32 %v940, %v940
        %v1197 = vmul.f32 %v941, %v941
        %v1198 = vmul.f32 %v942, %v942
        %v1199 = vmul.f32 %v943, %v943
        %v1200 = vmul.f32 %v944, %v944
        %v1201 = vmul.f32 %v945, %v945
        %v1202 = vmul.f32 %v946, %v946
        %v1203 = vmul.f32 %v947, %v947
        %v1204 = vmul.f32 %v948, %v948
        %v1205 = vmul.f32 %v949, %v949
        %v1206 = vmul.f32 %v950, %v950
        %v1207 = vmul.f32 %v951, %v951
        %v1208 = vmul.f32 %v952, %v952
        %v1209 = vmul.f32 %v953, %v953
        %v1210 = vmul.f32 %v954, %v954
        %v1211 = vmul.f32 %v955, %v955
        %v1212 = vmul.f32 %v956, %v956
        %v1213 = vmul.f32 %v957, %v957
        %v1214 = vmul.f32 %v958, %v958
        %v1215 = vmul.f32 %v959, %v959
        %v1216 = vmul.f32 %v960, %v960
        %v1217 = vmul.f32 %v961, %v961
        %v1218 = vmul.f32 %v962, %v962
        %v1219 = vmul.f32 %v963, %v963
        %v1220 = vmul.f32 %v964, %v964
        %v1221 = vmul.f32 %v965, %v965
        %v1222 = vmul.f32 %v966, %v966
        %v1223 = vmul.f32 %v967, %v967
        %v1224 = vmul.f32 %v968, %v968
        %v1225 = vadd.f32 %v1097, %v1161
        %v1226 = vadd.f32 %v1098, %v1162
        %v1227 = vadd.f32 %v1099, %v1163
        %v1228 = vadd.f32 %v1100, %v1164
        %v1229 = vadd.f32 %v1101, %v1165
        %v1230 = vadd.f32 %v1102, %v1166
        %v1231 = vadd.f32 %v1103, %v1167
        %v1232 = vadd.f32 %v1104, %v1168
        %v1233 = vadd.f32 %v1105, %v1169
        %v1234 = vadd.f32 %v1106, %v1170
        %v1235 = vadd.f32 %v1107, %v1171
        %v1236 = vadd.f32 %v1108, %v1172
        %v1237 = vadd.f32 %v1109, %v1173
        %v1238 = vadd.f32 %v1110, %v1174
        %v1239 = vadd.f32 %v1111, %v1175
        %v1240 = vadd.f32 %v1112, %v1176
        %v1241 = vadd.f32 %v1113, %v1177
        %v1242 = vadd.f32 %v1114, %v1178
        %v1243 = vadd.f32 %v1115, %v1179
        %v1244 = vadd.f32 %v1116, %v1180
        %v1245 = vadd.f32 %v1117, %v1181
        %v1246 = vadd.f32 %v1118, %v1182
        %v1247 = vadd.f32 %v1119, %v1183
        %v1248 = vadd.f32 %v1120, %v1184
        %v1249 = vadd.f32 %v1121, %v1185
        %v1250 = vadd.f32 %v1122, %v1186
        %v1251 = vadd.f32 %v1123, %v1187
        %v1252 = vadd.f32 %v1124, %v1188
        %v1253 = vadd.f32 %v1125, %v1189
        %v1254 = vadd.f32 %v1126, %v1190
        %v1255 = vadd.f32 %v1127, %v1191
        %v1256 = vadd.f32 %v1128, %v1192
        %v1257 = vadd.f32 %v1129, %v1193
        %v1258 = vadd.f32 %v1130, %v1194
        %v1259 = vadd.f32 %v1131, %v1195
        %v1260 = vadd.f32 %v1132, %v1196
        %v1261 = vadd.f32 %v1133, %v1197
        %v1262 = vadd.f32 %v1134, %v1198
        %v1263 = vadd.f32 %v1135, %v1199
        %v1264 = vadd.f32 %v1136, %v1200
        %v1265 = vadd.f32 %v1137, %v1201
        %v1266 = vadd.f32 %v1138, %v1202
        %v1267 = vadd.f32 %v1139, %v1203
        %v1268 = vadd.f32 %v1140, %v1204
        %v1269 = vadd.f32 %v1141, %v1205
        %v1270 = vadd.f32 %v1142, %v1206
        %v1271 = vadd.f32 %v1143, %v1207
        %v1272 = vadd.f32 %v1144, %v1208
        %v1273 = vadd.f32 %v1145, %v1209
        %v1274 = vadd.f32 %v1146, %v1210
        %v1275 = vadd.f32 %v1147, %v1211
        %v1276 = vadd.f32 %v1148, %v1212
        %v1277 = vadd.f32 %v1149, %v1213
        %v1278 = vadd.f32 %v1150, %v1214
        %v1279 = vadd.f32 %v1151, %v1215
        %v1280 = vadd.f32 %v1152, %v1216
        %v1281 = vadd.f32 %v1153, %v1217
        %v1282 = vadd.f32 %v1154, %v1218
        %v1283 = vadd.f32 %v1155, %v1219
        %v1284 = vadd.f32 %v1156, %v1220
        %v1285 = vadd.f32 %v1157, %v1221
        %v1286 = vadd.f32 %v1158, %v1222
        %v1287 = vadd.f32 %v1159, %v1223
        %v1288 = vadd.f32 %v1160, %v1224
        %p1289 = scmp.eq.s32.totalorder %s34, 0
        // Predicated region
        $region37: #{tpu_custom_call.1} parent=27 // pred_check
          %p1290 = pneg %p1289
        $region38: #{tpu_custom_call.1} parent=27 // pred_check_branch
          %1292 = sbr.rel (%p1290) target = $region40
        $region39: #{tpu_custom_call.1} parent=27 // pred_region
          %1293 = vst [vmem:[#allocation2] sm:$0xff] inf
          %1294 = vst [vmem:[#allocation2 + $0x8] sm:$0xff] inf
          %1295 = vst [vmem:[#allocation2 + $0x10] sm:$0xff] inf
          %1296 = vst [vmem:[#allocation2 + $0x18] sm:$0xff] inf
          %1297 = vst [vmem:[#allocation2 + $0x20] sm:$0xff] inf
          %1298 = vst [vmem:[#allocation2 + $0x28] sm:$0xff] inf
          %1299 = vst [vmem:[#allocation2 + $0x30] sm:$0xff] inf
          %1300 = vst [vmem:[#allocation2 + $0x38] sm:$0xff] inf
          %1301 = vst [vmem:[#allocation2 + $0x40] sm:$0xff] inf
          %1302 = vst [vmem:[#allocation2 + $0x48] sm:$0xff] inf
          %1303 = vst [vmem:[#allocation2 + $0x50] sm:$0xff] inf
          %1304 = vst [vmem:[#allocation2 + $0x58] sm:$0xff] inf
          %1305 = vst [vmem:[#allocation2 + $0x60] sm:$0xff] inf
          %1306 = vst [vmem:[#allocation2 + $0x68] sm:$0xff] inf
          %1307 = vst [vmem:[#allocation2 + $0x70] sm:$0xff] inf
          %1308 = vst [vmem:[#allocation2 + $0x78] sm:$0xff] inf
          %1309 = vst [vmem:[#allocation2 + $0x80] sm:$0xff] inf
          %1310 = vst [vmem:[#allocation2 + $0x88] sm:$0xff] inf
          %1311 = vst [vmem:[#allocation2 + $0x90] sm:$0xff] inf
          %1312 = vst [vmem:[#allocation2 + $0x98] sm:$0xff] inf
          %1313 = vst [vmem:[#allocation2 + $0xa0] sm:$0xff] inf
          %1314 = vst [vmem:[#allocation2 + $0xa8] sm:$0xff] inf
          %1315 = vst [vmem:[#allocation2 + $0xb0] sm:$0xff] inf
          %1316 = vst [vmem:[#allocation2 + $0xb8] sm:$0xff] inf
          %1317 = vst [vmem:[#allocation2 + $0xc0] sm:$0xff] inf
          %1318 = vst [vmem:[#allocation2 + $0xc8] sm:$0xff] inf
          %1319 = vst [vmem:[#allocation2 + $0xd0] sm:$0xff] inf
          %1320 = vst [vmem:[#allocation2 + $0xd8] sm:$0xff] inf
          %1321 = vst [vmem:[#allocation2 + $0xe0] sm:$0xff] inf
          %1322 = vst [vmem:[#allocation2 + $0xe8] sm:$0xff] inf
          %1323 = vst [vmem:[#allocation2 + $0xf0] sm:$0xff] inf
          %1324 = vst [vmem:[#allocation2 + $0xf8] sm:$0xff] inf
        $region40: #{tpu_custom_call.1} parent=27 // pred_fallthru
          _
        %v1325 = vmin.f32 %v1225, %v1226
        %v1326 = vmin.f32 %v1227, %v1228
        %v1327 = vmin.f32 %v1229, %v1230
        %v1328 = vmin.f32 %v1231, %v1232
        %v1329 = vmin.f32 %v1233, %v1234
        %v1330 = vmin.f32 %v1235, %v1236
        %v1331 = vmin.f32 %v1237, %v1238
        %v1332 = vmin.f32 %v1239, %v1240
        %v1333 = vmin.f32 %v1241, %v1242
        %v1334 = vmin.f32 %v1243, %v1244
        %v1335 = vmin.f32 %v1245, %v1246
        %v1336 = vmin.f32 %v1247, %v1248
        %v1337 = vmin.f32 %v1249, %v1250
        %v1338 = vmin.f32 %v1251, %v1252
        %v1339 = vmin.f32 %v1253, %v1254
        %v1340 = vmin.f32 %v1255, %v1256
        %v1341 = vmin.f32 %v1257, %v1258
        %v1342 = vmin.f32 %v1259, %v1260
        %v1343 = vmin.f32 %v1261, %v1262
        %v1344 = vmin.f32 %v1263, %v1264
        %v1345 = vmin.f32 %v1265, %v1266
        %v1346 = vmin.f32 %v1267, %v1268
        %v1347 = vmin.f32 %v1269, %v1270
        %v1348 = vmin.f32 %v1271, %v1272
        %v1349 = vmin.f32 %v1273, %v1274
        %v1350 = vmin.f32 %v1275, %v1276
        %v1351 = vmin.f32 %v1277, %v1278
        %v1352 = vmin.f32 %v1279, %v1280
        %v1353 = vmin.f32 %v1281, %v1282
        %v1354 = vmin.f32 %v1283, %v1284
        %v1355 = vmin.f32 %v1285, %v1286
        %v1356 = vmin.f32 %v1287, %v1288
        %v1357 = vld [vmem:[#allocation2] sm:$0xff]
        %v1358 = vld [vmem:[#allocation2 + $0x8] sm:$0xff]
        %v1359 = vld [vmem:[#allocation2 + $0x10] sm:$0xff]
        %v1360 = vld [vmem:[#allocation2 + $0x18] sm:$0xff]
        %v1361 = vld [vmem:[#allocation2 + $0x20] sm:$0xff]
        %v1362 = vld [vmem:[#allocation2 + $0x28] sm:$0xff]
        %v1363 = vld [vmem:[#allocation2 + $0x30] sm:$0xff]
        %v1364 = vld [vmem:[#allocation2 + $0x38] sm:$0xff]
        %v1365 = vld [vmem:[#allocation2 + $0x40] sm:$0xff]
        %v1366 = vld [vmem:[#allocation2 + $0x48] sm:$0xff]
        %v1367 = vld [vmem:[#allocation2 + $0x50] sm:$0xff]
        %v1368 = vld [vmem:[#allocation2 + $0x58] sm:$0xff]
        %v1369 = vld [vmem:[#allocation2 + $0x60] sm:$0xff]
        %v1370 = vld [vmem:[#allocation2 + $0x68] sm:$0xff]
        %v1371 = vld [vmem:[#allocation2 + $0x70] sm:$0xff]
        %v1372 = vld [vmem:[#allocation2 + $0x78] sm:$0xff]
        %v1373 = vld [vmem:[#allocation2 + $0x80] sm:$0xff]
        %v1374 = vld [vmem:[#allocation2 + $0x88] sm:$0xff]
        %v1375 = vld [vmem:[#allocation2 + $0x90] sm:$0xff]
        %v1376 = vld [vmem:[#allocation2 + $0x98] sm:$0xff]
        %v1377 = vld [vmem:[#allocation2 + $0xa0] sm:$0xff]
        %v1378 = vld [vmem:[#allocation2 + $0xa8] sm:$0xff]
        %v1379 = vld [vmem:[#allocation2 + $0xb0] sm:$0xff]
        %v1380 = vld [vmem:[#allocation2 + $0xb8] sm:$0xff]
        %v1381 = vld [vmem:[#allocation2 + $0xc0] sm:$0xff]
        %v1382 = vld [vmem:[#allocation2 + $0xc8] sm:$0xff]
        %v1383 = vld [vmem:[#allocation2 + $0xd0] sm:$0xff]
        %v1384 = vld [vmem:[#allocation2 + $0xd8] sm:$0xff]
        %v1385 = vld [vmem:[#allocation2 + $0xe0] sm:$0xff]
        %v1386 = vld [vmem:[#allocation2 + $0xe8] sm:$0xff]
        %v1387 = vld [vmem:[#allocation2 + $0xf0] sm:$0xff]
        %v1388 = vld [vmem:[#allocation2 + $0xf8] sm:$0xff]
        %v1389 = vmin.f32 %v1357, %v1325
        %v1390 = vmin.f32 %v1358, %v1326
        %v1391 = vmin.f32 %v1359, %v1327
        %v1392 = vmin.f32 %v1360, %v1328
        %v1393 = vmin.f32 %v1361, %v1329
        %v1394 = vmin.f32 %v1362, %v1330
        %v1395 = vmin.f32 %v1363, %v1331
        %v1396 = vmin.f32 %v1364, %v1332
        %v1397 = vmin.f32 %v1365, %v1333
        %v1398 = vmin.f32 %v1366, %v1334
        %v1399 = vmin.f32 %v1367, %v1335
        %v1400 = vmin.f32 %v1368, %v1336
        %v1401 = vmin.f32 %v1369, %v1337
        %v1402 = vmin.f32 %v1370, %v1338
        %v1403 = vmin.f32 %v1371, %v1339
        %v1404 = vmin.f32 %v1372, %v1340
        %v1405 = vmin.f32 %v1373, %v1341
        %v1406 = vmin.f32 %v1374, %v1342
        %v1407 = vmin.f32 %v1375, %v1343
        %v1408 = vmin.f32 %v1376, %v1344
        %v1409 = vmin.f32 %v1377, %v1345
        %v1410 = vmin.f32 %v1378, %v1346
        %v1411 = vmin.f32 %v1379, %v1347
        %v1412 = vmin.f32 %v1380, %v1348
        %v1413 = vmin.f32 %v1381, %v1349
        %v1414 = vmin.f32 %v1382, %v1350
        %v1415 = vmin.f32 %v1383, %v1351
        %v1416 = vmin.f32 %v1384, %v1352
        %v1417 = vmin.f32 %v1385, %v1353
        %v1418 = vmin.f32 %v1386, %v1354
        %v1419 = vmin.f32 %v1387, %v1355
        %v1420 = vmin.f32 %v1388, %v1356
        %1421 = vst [vmem:[#allocation2] sm:$0xff] %v1389
        %1422 = vst [vmem:[#allocation2 + $0x8] sm:$0xff] %v1390
        %1423 = vst [vmem:[#allocation2 + $0x10] sm:$0xff] %v1391
        %1424 = vst [vmem:[#allocation2 + $0x18] sm:$0xff] %v1392
        %1425 = vst [vmem:[#allocation2 + $0x20] sm:$0xff] %v1393
        %1426 = vst [vmem:[#allocation2 + $0x28] sm:$0xff] %v1394
        %1427 = vst [vmem:[#allocation2 + $0x30] sm:$0xff] %v1395
        %1428 = vst [vmem:[#allocation2 + $0x38] sm:$0xff] %v1396
        %1429 = vst [vmem:[#allocation2 + $0x40] sm:$0xff] %v1397
        %1430 = vst [vmem:[#allocation2 + $0x48] sm:$0xff] %v1398
        %1431 = vst [vmem:[#allocation2 + $0x50] sm:$0xff] %v1399
        %1432 = vst [vmem:[#allocation2 + $0x58] sm:$0xff] %v1400
        %1433 = vst [vmem:[#allocation2 + $0x60] sm:$0xff] %v1401
        %1434 = vst [vmem:[#allocation2 + $0x68] sm:$0xff] %v1402
        %1435 = vst [vmem:[#allocation2 + $0x70] sm:$0xff] %v1403
        %1436 = vst [vmem:[#allocation2 + $0x78] sm:$0xff] %v1404
        %1437 = vst [vmem:[#allocation2 + $0x80] sm:$0xff] %v1405
        %1438 = vst [vmem:[#allocation2 + $0x88] sm:$0xff] %v1406
        %1439 = vst [vmem:[#allocation2 + $0x90] sm:$0xff] %v1407
        %1440 = vst [vmem:[#allocation2 + $0x98] sm:$0xff] %v1408
        %1441 = vst [vmem:[#allocation2 + $0xa0] sm:$0xff] %v1409
        %1442 = vst [vmem:[#allocation2 + $0xa8] sm:$0xff] %v1410
        %1443 = vst [vmem:[#allocation2 + $0xb0] sm:$0xff] %v1411
        %1444 = vst [vmem:[#allocation2 + $0xb8] sm:$0xff] %v1412
        %1445 = vst [vmem:[#allocation2 + $0xc0] sm:$0xff] %v1413
        %1446 = vst [vmem:[#allocation2 + $0xc8] sm:$0xff] %v1414
        %1447 = vst [vmem:[#allocation2 + $0xd0] sm:$0xff] %v1415
        %1448 = vst [vmem:[#allocation2 + $0xd8] sm:$0xff] %v1416
        %1449 = vst [vmem:[#allocation2 + $0xe0] sm:$0xff] %v1417
        %1450 = vst [vmem:[#allocation2 + $0xe8] sm:$0xff] %v1418
        %1451 = vst [vmem:[#allocation2 + $0xf0] sm:$0xff] %v1419
        %1452 = vst [vmem:[#allocation2 + $0xf8] sm:$0xff] %v1420
        // Predicated region
        $region41: #{tpu_custom_call.1} parent=27 // pred_check
          %p1453 = pneg %p1289
        $region42: #{tpu_custom_call.1} parent=27 // pred_check_branch
          %1455 = sbr.rel (%p1453) target = $region44
        $region43: #{tpu_custom_call.1} parent=27 // pred_region
          %v1456 = vld [vmem:[#allocation2] sm:$0xff]
          %v1457 = vld [vmem:[#allocation2 + $0x8] sm:$0xff]
          %v1458 = vld [vmem:[#allocation2 + $0x10] sm:$0xff]
          %v1459 = vld [vmem:[#allocation2 + $0x18] sm:$0xff]
          %v1460 = vld [vmem:[#allocation2 + $0x20] sm:$0xff]
          %v1461 = vld [vmem:[#allocation2 + $0x28] sm:$0xff]
          %v1462 = vld [vmem:[#allocation2 + $0x30] sm:$0xff]
          %v1463 = vld [vmem:[#allocation2 + $0x38] sm:$0xff]
          %v1464 = vld [vmem:[#allocation2 + $0x40] sm:$0xff]
          %v1465 = vld [vmem:[#allocation2 + $0x48] sm:$0xff]
          %v1466 = vld [vmem:[#allocation2 + $0x50] sm:$0xff]
          %v1467 = vld [vmem:[#allocation2 + $0x58] sm:$0xff]
          %v1468 = vld [vmem:[#allocation2 + $0x60] sm:$0xff]
          %v1469 = vld [vmem:[#allocation2 + $0x68] sm:$0xff]
          %v1470 = vld [vmem:[#allocation2 + $0x70] sm:$0xff]
          %v1471 = vld [vmem:[#allocation2 + $0x78] sm:$0xff]
          %v1472 = vld [vmem:[#allocation2 + $0x80] sm:$0xff]
          %v1473 = vld [vmem:[#allocation2 + $0x88] sm:$0xff]
          %v1474 = vld [vmem:[#allocation2 + $0x90] sm:$0xff]
          %v1475 = vld [vmem:[#allocation2 + $0x98] sm:$0xff]
          %v1476 = vld [vmem:[#allocation2 + $0xa0] sm:$0xff]
          %v1477 = vld [vmem:[#allocation2 + $0xa8] sm:$0xff]
          %v1478 = vld [vmem:[#allocation2 + $0xb0] sm:$0xff]
          %v1479 = vld [vmem:[#allocation2 + $0xb8] sm:$0xff]
          %v1480 = vld [vmem:[#allocation2 + $0xc0] sm:$0xff]
          %v1481 = vld [vmem:[#allocation2 + $0xc8] sm:$0xff]
          %v1482 = vld [vmem:[#allocation2 + $0xd0] sm:$0xff]
          %v1483 = vld [vmem:[#allocation2 + $0xd8] sm:$0xff]
          %v1484 = vld [vmem:[#allocation2 + $0xe0] sm:$0xff]
          %v1485 = vld [vmem:[#allocation2 + $0xe8] sm:$0xff]
          %v1486 = vld [vmem:[#allocation2 + $0xf0] sm:$0xff]
          %v1487 = vld [vmem:[#allocation2 + $0xf8] sm:$0xff]
          %1488 = vxpose.xlu0.b32.start [1/16] %v1456, 128
          %1489 = vxpose.xlu0.b32.cont [2/16] %v1457, 128
          %1490 = vxpose.xlu0.b32.cont [3/16] %v1458, 128
          %1491 = vxpose.xlu0.b32.cont [4/16] %v1459, 128
          %1492 = vxpose.xlu0.b32.cont [5/16] %v1460, 128
          %1493 = vxpose.xlu0.b32.cont [6/16] %v1461, 128
          %1494 = vxpose.xlu0.b32.cont [7/16] %v1462, 128
          %1495 = vxpose.xlu0.b32.cont [8/16] %v1463, 128
          %1496 = vxpose.xlu0.b32.cont [9/16] %v1464, 128
          %1497 = vxpose.xlu0.b32.cont [10/16] %v1465, 128
          %1498 = vxpose.xlu0.b32.cont [11/16] %v1466, 128
          %1499 = vxpose.xlu0.b32.cont [12/16] %v1467, 128
          %1500 = vxpose.xlu0.b32.cont [13/16] %v1468, 128
          %1501 = vxpose.xlu0.b32.cont [14/16] %v1469, 128
          %1502 = vxpose.xlu0.b32.cont [15/16] %v1470, 128
          %1503 = vxpose.xlu0.b32.end [16/16] %v1471, 128
          %v1504 = vpop.trf.xlu0
          %v1505 = vpop.trf.xlu0
          %v1506 = vpop.trf.xlu0
          %v1507 = vpop.trf.xlu0
          %v1508 = vpop.trf.xlu0
          %v1509 = vpop.trf.xlu0
          %v1510 = vpop.trf.xlu0
          %v1511 = vpop.trf.xlu0
          %v1512 = vpop.trf.xlu0
          %v1513 = vpop.trf.xlu0
          %v1514 = vpop.trf.xlu0
          %v1515 = vpop.trf.xlu0
          %v1516 = vpop.trf.xlu0
          %v1517 = vpop.trf.xlu0
          %v1518 = vpop.trf.xlu0
          %v1519 = vpop.trf.xlu0
          %1520 = vxpose.xlu0.b32.start [1/16] %v1472, 128
          %1521 = vxpose.xlu0.b32.cont [2/16] %v1473, 128
          %1522 = vxpose.xlu0.b32.cont [3/16] %v1474, 128
          %1523 = vxpose.xlu0.b32.cont [4/16] %v1475, 128
          %1524 = vxpose.xlu0.b32.cont [5/16] %v1476, 128
          %1525 = vxpose.xlu0.b32.cont [6/16] %v1477, 128
          %1526 = vxpose.xlu0.b32.cont [7/16] %v1478, 128
          %1527 = vxpose.xlu0.b32.cont [8/16] %v1479, 128
          %1528 = vxpose.xlu0.b32.cont [9/16] %v1480, 128
          %1529 = vxpose.xlu0.b32.cont [10/16] %v1481, 128
          %1530 = vxpose.xlu0.b32.cont [11/16] %v1482, 128
          %1531 = vxpose.xlu0.b32.cont [12/16] %v1483, 128
          %1532 = vxpose.xlu0.b32.cont [13/16] %v1484, 128
          %1533 = vxpose.xlu0.b32.cont [14/16] %v1485, 128
          %1534 = vxpose.xlu0.b32.cont [15/16] %v1486, 128
          %1535 = vxpose.xlu0.b32.end [16/16] %v1487, 128
          %v1536 = vpop.trf.xlu0
          %v1537 = vpop.trf.xlu0
          %v1538 = vpop.trf.xlu0
          %v1539 = vpop.trf.xlu0
          %v1540 = vpop.trf.xlu0
          %v1541 = vpop.trf.xlu0
          %v1542 = vpop.trf.xlu0
          %v1543 = vpop.trf.xlu0
          %v1544 = vpop.trf.xlu0
          %v1545 = vpop.trf.xlu0
          %v1546 = vpop.trf.xlu0
          %v1547 = vpop.trf.xlu0
          %v1548 = vpop.trf.xlu0
          %v1549 = vpop.trf.xlu0
          %v1550 = vpop.trf.xlu0
          %v1551 = vpop.trf.xlu0
          %v1552 = vmin.f32 %v1504, %v1506
          %v1553 = vmin.f32 %v1505, %v1507
          %v1554 = vmin.f32 %v1552, %v1508
          %v1555 = vmin.f32 %v1553, %v1509
          %v1556 = vmin.f32 %v1554, %v1510
          %v1557 = vmin.f32 %v1555, %v1511
          %v1558 = vmin.f32 %v1556, %v1512
          %v1559 = vmin.f32 %v1557, %v1513
          %v1560 = vmin.f32 %v1558, %v1514
          %v1561 = vmin.f32 %v1559, %v1515
          %v1562 = vmin.f32 %v1560, %v1516
          %v1563 = vmin.f32 %v1561, %v1517
          %v1564 = vmin.f32 %v1562, %v1518
          %v1565 = vmin.f32 %v1563, %v1519
          %v1566 = vmin.f32 %v1564, %v1565
          %v1567 = vrot.slane %v1566, 4
          %v1568 = vmin.f32 %v1566, %v1567
          %v1569 = vrot.slane %v1568, 2
          %v1570 = vmin.f32 %v1568, %v1569
          %v1571 = vrot.slane %v1570, 1
          %v1572 = vmin.f32 %v1570, %v1571
          %v1573 = vmin.f32 %v1536, %v1538
          %v1574 = vmin.f32 %v1537, %v1539
          %v1575 = vmin.f32 %v1573, %v1540
          %v1576 = vmin.f32 %v1574, %v1541
          %v1577 = vmin.f32 %v1575, %v1542
          %v1578 = vmin.f32 %v1576, %v1543
          %v1579 = vmin.f32 %v1577, %v1544
          %v1580 = vmin.f32 %v1578, %v1545
          %v1581 = vmin.f32 %v1579, %v1546
          %v1582 = vmin.f32 %v1580, %v1547
          %v1583 = vmin.f32 %v1581, %v1548
          %v1584 = vmin.f32 %v1582, %v1549
          %v1585 = vmin.f32 %v1583, %v1550
          %v1586 = vmin.f32 %v1584, %v1551
          %v1587 = vmin.f32 %v1585, %v1586
          %v1588 = vrot.slane %v1587, 4
          %v1589 = vmin.f32 %v1587, %v1588
          %v1590 = vrot.slane %v1589, 2
          %v1591 = vmin.f32 %v1589, %v1590
          %v1592 = vrot.slane %v1591, 1
          %v1593 = vmin.f32 %v1591, %v1592
          %v1596 = vcombine.low %v1572, %v1593
          %v1598 = vunpack.c.l.s4 1966171168
          %v1599 = vunpack.c.0.s8 %v1598
          %v1600 = vlaneseq
          %v1601 = vshrl.u32 %v1600, 7
          %v1602 = vsub.s32 %v1599, %v1601
          %v1603 = vrot.slane %v1596, %v1602
          %v1605 = vunpack.c.l.s4 1966171168
          %v1606 = vunpack.c.0.s8 %v1605
          %v1607 = vlaneseq
          %v1608 = vshrl.u32 %v1607, 7
          %v1609 = vsub.s32 %v1606, %v1608
          %v1610 = vrot.slane %v1603, %v1609
          %v1612 = vlaneseq
          %vm1613 = vcmp.ge.s32.totalorder %v1612, 0
          %vm1614 = vcmp.lt.s32.totalorder %v1612, 256
          %vm1615 = vmand %vm1613, %vm1614
          %1616 = vst.msk [vmem:[%s261] sm:$0x3] %vm1615, %v1610
        $region44: #{tpu_custom_call.1} parent=27 // pred_fallthru
          _
        %v1617 = vmin.f32 %v1225, %v1229
        %v1618 = vmin.f32 %v1227, %v1231
        %v1619 = vmin.f32 %v1617, %v1233
        %v1620 = vmin.f32 %v1618, %v1235
        %v1621 = vmin.f32 %v1619, %v1237
        %v1622 = vmin.f32 %v1620, %v1239
        %v1623 = vmin.f32 %v1621, %v1241
        %v1624 = vmin.f32 %v1622, %v1243
        %v1625 = vmin.f32 %v1623, %v1245
        %v1626 = vmin.f32 %v1624, %v1247
        %v1627 = vmin.f32 %v1625, %v1249
        %v1628 = vmin.f32 %v1626, %v1251
        %v1629 = vmin.f32 %v1627, %v1253
        %v1630 = vmin.f32 %v1628, %v1255
        %v1631 = vmin.f32 %v1629, %v1257
        %v1632 = vmin.f32 %v1630, %v1259
        %v1633 = vmin.f32 %v1631, %v1261
        %v1634 = vmin.f32 %v1632, %v1263
        %v1635 = vmin.f32 %v1633, %v1265
        %v1636 = vmin.f32 %v1634, %v1267
        %v1637 = vmin.f32 %v1635, %v1269
        %v1638 = vmin.f32 %v1636, %v1271
        %v1639 = vmin.f32 %v1637, %v1273
        %v1640 = vmin.f32 %v1638, %v1275
        %v1641 = vmin.f32 %v1639, %v1277
        %v1642 = vmin.f32 %v1640, %v1279
        %v1643 = vmin.f32 %v1641, %v1281
        %v1644 = vmin.f32 %v1642, %v1283
        %v1645 = vmin.f32 %v1643, %v1285
        %v1646 = vmin.f32 %v1644, %v1287
        %v1647 = vmin.f32 %v1645, %v1646
        %v1648 = vrot.slane %v1647, 4
        %v1649 = vmin.f32 %v1647, %v1648
        %v1650 = vrot.slane %v1649, 2
        %v1651 = vmin.f32 %v1649, %v1650
        %v1652 = vrot.slane %v1651, 1
        %v1653 = vmin.f32 %v1651, %v1652
        %v1654 = vmin.f32 %v1226, %v1230
        %v1655 = vmin.f32 %v1228, %v1232
        %v1656 = vmin.f32 %v1654, %v1234
        %v1657 = vmin.f32 %v1655, %v1236
        %v1658 = vmin.f32 %v1656, %v1238
        %v1659 = vmin.f32 %v1657, %v1240
        %v1660 = vmin.f32 %v1658, %v1242
        %v1661 = vmin.f32 %v1659, %v1244
        %v1662 = vmin.f32 %v1660, %v1246
        %v1663 = vmin.f32 %v1661, %v1248
        %v1664 = vmin.f32 %v1662, %v1250
        %v1665 = vmin.f32 %v1663, %v1252
        %v1666 = vmin.f32 %v1664, %v1254
        %v1667 = vmin.f32 %v1665, %v1256
        %v1668 = vmin.f32 %v1666, %v1258
        %v1669 = vmin.f32 %v1667, %v1260
        %v1670 = vmin.f32 %v1668, %v1262
        %v1671 = vmin.f32 %v1669, %v1264
        %v1672 = vmin.f32 %v1670, %v1266
        %v1673 = vmin.f32 %v1671, %v1268
        %v1674 = vmin.f32 %v1672, %v1270
        %v1675 = vmin.f32 %v1673, %v1272
        %v1676 = vmin.f32 %v1674, %v1274
        %v1677 = vmin.f32 %v1675, %v1276
        %v1678 = vmin.f32 %v1676, %v1278
        %v1679 = vmin.f32 %v1677, %v1280
        %v1680 = vmin.f32 %v1678, %v1282
        %v1681 = vmin.f32 %v1679, %v1284
        %v1682 = vmin.f32 %v1680, %v1286
        %v1683 = vmin.f32 %v1681, %v1288
        %v1684 = vmin.f32 %v1682, %v1683
        %v1685 = vrot.slane %v1684, 4
        %v1686 = vmin.f32 %v1684, %v1685
        %v1687 = vrot.slane %v1686, 2
        %v1688 = vmin.f32 %v1686, %v1687
        %v1689 = vrot.slane %v1688, 1
        %v1690 = vmin.f32 %v1688, %v1689
        %p1691 = scmp.eq.s32.totalorder %s33, 0
        // Predicated region
        $region45: #{tpu_custom_call.1} parent=27 // pred_check
          %p1692 = pneg %p1691
        $region46: #{tpu_custom_call.1} parent=27 // pred_check_branch
          %1694 = sbr.rel (%p1692) target = $region48
        $region47: #{tpu_custom_call.1} parent=27 // pred_region
          %s1695 = smul.u32 %s34, 2
          %s1696 = scalar_lea.vmem [#allocation3], %s1695
          %v1697 = vlaneseq
          %vm1698 = vcmp.ge.s32.totalorder %v1697, 0
          %vm1699 = vcmp.lt.s32.totalorder %v1697, 256
          %vm1700 = vmand %vm1698, %vm1699
          %1701 = vst.msk [vmem:[%s1696] sm:$0x3] %vm1700, inf
        $region48: #{tpu_custom_call.1} parent=27 // pred_fallthru
          _
        %s1702 = smul.u32 %s34, 2
        %s1703 = scalar_lea.vmem [#allocation3], %s1702
        %v1704 = vld [vmem:[%s1703] sm:$0x3]
        %v1707 = vcombine.low %v1653, %v1690
        %v1709 = vunpack.c.l.s4 1966171168
        %v1710 = vunpack.c.0.s8 %v1709
        %v1711 = vlaneseq
        %v1712 = vshrl.u32 %v1711, 7
        %v1713 = vsub.s32 %v1710, %v1712
        %v1714 = vrot.slane %v1707, %v1713
        %v1716 = vunpack.c.l.s4 1966171168
        %v1717 = vunpack.c.0.s8 %v1716
        %v1718 = vlaneseq
        %v1719 = vshrl.u32 %v1718, 7
        %v1720 = vsub.s32 %v1717, %v1719
        %v1721 = vrot.slane %v1714, %v1720
        %v1723 = vmin.f32 %v1704, %v1721
        %v1724 = vlaneseq
        %vm1725 = vcmp.ge.s32.totalorder %v1724, 0
        %vm1726 = vcmp.lt.s32.totalorder %v1724, 256
        %vm1727 = vmand %vm1725, %vm1726
        %1728 = vst.msk [vmem:[%s1703] sm:$0x3] %vm1727, %v1723
        %1729 = vst.msk [vmem:[%s268] sm:$0x3] %vm1727, %v1723
        %s1730 = sand.u32 %s112, 1
        %s1731 = scalar_lea.sflag [#allocation6], %s1730
        %s1732 = sand.u32 %s112, 1
        %s1733 = smul.addr %s1732, 2
        %s1734 = scalar_lea.vmem [#allocation9], %s1733
        %s1735 = sand.u32 %s140, 1
        %s1736 = scalar_lea.sflag [#allocation11], %s1735
        %s1737 = sand.u32 %s140, 1
        %s1738 = smul.addr %s1737, 2
        %s1739 = scalar_lea.vmem [#allocation10], %s1738
        // Predicated region
        $region49: #{tpu_custom_call.1} parent=27 // pred_check
          %p1740 = pneg %p122
        $region50: #{tpu_custom_call.1} parent=27 // pred_check_branch
          %1742 = sbr.rel (%p1740) target = $region52
        $region51: #{tpu_custom_call.1} parent=27 // pred_region
          %s1743 = smul.u32 2, %s33
          %s1745 = ssub.s32 32, 32
          %1746 = vsyncadd %s1731, %s1745
          %s1747 = smul.addr %s32, 2
          %s1748 = sadd.s32 %s1743, %s1747
          %s1749 = smul.addr %s1748, 16
          %s1750 = scalar_lea.hbm %s2, %s1749
          %s1752 = sshll.u32 %s1734, 4
          %s1753 = int_to_ptr.vmem [resolvable:$true] %s1752
          %1755 = dma.vmem_to_hbm [thread:$0]  %s1753, 32, %s1750, %s1731
        $region52: #{tpu_custom_call.1} parent=27 // pred_fallthru
          _
        // Predicated region
        $region53: #{tpu_custom_call.1} parent=27 // pred_check
          %p1756 = pneg %p150
        $region54: #{tpu_custom_call.1} parent=27 // pred_check_branch
          %1758 = sbr.rel (%p1756) target = $region56
        $region55: #{tpu_custom_call.1} parent=27 // pred_region
          %s1759 = smul.u32 2, %s34
          %s1761 = ssub.s32 32, 32
          %1762 = vsyncadd %s1736, %s1761
          %s1763 = smul.addr %s32, 2
          %s1764 = sadd.s32 %s1759, %s1763
          %s1765 = smul.addr %s1764, 16
          %s1766 = scalar_lea.hbm %s3, %s1765
          %s1768 = sshll.u32 %s1739, 4
          %s1769 = int_to_ptr.vmem [resolvable:$true] %s1768
          %1771 = dma.vmem_to_hbm [thread:$0]  %s1769, 32, %s1766, %s1736
        $region56: #{tpu_custom_call.1} parent=27 // pred_fallthru
          _
      $region28: #{tpu_custom_call.1} parent=5 // pred_fallthru
        _
      %p1772 = scmp.le.s32.totalorder 2, %s22
      // Predicated region
      $region57: #{tpu_custom_call.1} parent=5 // pred_check
        %p1773 = pneg %p1772
      $region58: #{tpu_custom_call.1} parent=5 // pred_check_branch
        %1775 = sbr.rel (%p1773) target = $region60
      $region59: #{tpu_custom_call.1} parent=5 // pred_region
        %s1776 = ssub.s32 %s22, 2
        // Predicated region
        $region61: #{tpu_custom_call.1} parent=59 // pred_check
          %p1777 = pneg %p128
        $region62: #{tpu_custom_call.1} parent=59 // pred_check_branch
          %1779 = sbr.rel (%p1777) target = $region64
        $region63: #{tpu_custom_call.1} parent=59 // pred_region
          %s1780 = sand.u32 %s113, 1
          %s1781 = scalar_lea.sflag [#allocation6], %s1780
          %s1782 = sand.u32 %s113, 1
          %s1783 = smul.addr %s1782, 2
          %s1784 = scalar_lea.vmem [#allocation9], %s1783
          %1785 = dma.done %s1781, 32
        $region64: #{tpu_custom_call.1} parent=59 // pred_fallthru
          _
        // Predicated region
        $region65: #{tpu_custom_call.1} parent=59 // pred_check
          %p1786 = pneg %p156
        $region66: #{tpu_custom_call.1} parent=59 // pred_check_branch
          %1788 = sbr.rel (%p1786) target = $region68
        $region67: #{tpu_custom_call.1} parent=59 // pred_region
          %s1789 = sand.u32 %s141, 1
          %s1790 = scalar_lea.sflag [#allocation11], %s1789
          %s1791 = sand.u32 %s141, 1
          %s1792 = smul.addr %s1791, 2
          %s1793 = scalar_lea.vmem [#allocation10], %s1792
          %1794 = dma.done %s1790, 32
        $region68: #{tpu_custom_call.1} parent=59 // pred_fallthru
          _
      $region60: #{tpu_custom_call.1} parent=5 // pred_fallthru
        _
    $region6: #{tpu_custom_call.1} parent=1 // loop_footer
      %s26 = sadd.s32 1, %s22
    $region7: #{tpu_custom_call.1} parent=1 // loop_footer_branch
      %21 = sbr.rel target = $region3
    $region8: #{tpu_custom_call.1} parent=1 // loop_exit
      _
    %1795 = vsyncpa [#allocation5], 1
    %s1796 = scalar_lea.sflag [#allocation5], 1
    %1797 = vsyncpa %s1796, 1
    %1798 = vsyncpa [#allocation8], 1
    %s1799 = scalar_lea.sflag [#allocation8], 1
    %1800 = vsyncpa %s1799, 1
    %1801 = vsyncpa [#allocation6], 1
    %s1802 = scalar_lea.sflag [#allocation6], 1
    %1803 = vsyncpa %s1802, 1
    %1804 = vsyncpa [#allocation11], 1
    %s1805 = scalar_lea.sflag [#allocation11], 1
    %1806 = vsyncpa %s1805, 1

</llo_original>
